<compile_context>
chip_gen: v5e
topology: v5e:2x2
jax: 0.10.0
libtpu: 0.0.40
codegen_flags: <defaults>
</compile_context>

<pallas_src>
import functools

import jax
import jax.numpy as jnp
from jax.experimental import pallas as pl
from jax.experimental.pallas import tpu as pltpu

_BN_EPS = 1e-5
_LANE_TILE = 512                   # lane tile: multiple of 128, good operating point for mem-bound work
_VMEM_LIMIT = 32 * 1024 * 1024     # explicit scoped-VMEM budget, safe on v5e/v6e/v7x


def _round_up(a: int, b: int) -> int:
    return (a + b - 1) // b * b


def _compiler_params():
    return pltpu.CompilerParams(
        dimension_semantics=("parallel",),   # grid axis is embarrassingly parallel
        vmem_limit_bytes=_VMEM_LIMIT,
    )


# ---------------------------------------------------------------------------
# Kernel 1: 1x1 ("pointwise") conv as a matmul, fused with a per-out-channel scale.
# ---------------------------------------------------------------------------
def _pw_conv_kernel(x_ref, w_ref, s_ref, o_ref):
    # x: (Cin, T)   w: (Cout, Cin)   s: (Cout, 1)   o: (Cout, T)
    acc = jnp.dot(w_ref[...], x_ref[...], preferred_element_type=jnp.float32)
    o_ref[...] = (acc * s_ref[...]).astype(o_ref.dtype)


def pw_conv(x_cp, w, scale):
    """1x1 conv: (Cout, Cin) @ (Cin, P) -> (Cout, P), times per-out-channel `scale` (Cout, 1)."""
    cin, p = x_cp.shape
    cout = w.shape[0]
    cin_p, cout_p = _round_up(cin, 8), _round_up(cout, 8)      # friendly MXU/sublane tiling
    tile = min(_LANE_TILE, _round_up(p, 128))                  # lane-dense, multiple of 128
    p_pad = _round_up(p, tile)

    xp = jnp.pad(x_cp, ((0, cin_p - cin), (0, p_pad - p)))
    wp = jnp.pad(w.astype(jnp.float32), ((0, cout_p - cout), (0, cin_p - cin)))
    sp = jnp.pad(scale.astype(jnp.float32), ((0, cout_p - cout), (0, 0)))

    out = pl.pallas_call(
        _pw_conv_kernel,
        out_shape=jax.ShapeDtypeStruct((cout_p, p_pad), x_cp.dtype),
        grid_spec=pl.GridSpec(
            grid=(p_pad // tile,),
            in_specs=[
                pl.BlockSpec((cin_p, tile), lambda j: (0, j)),
                pl.BlockSpec((cout_p, cin_p), lambda j: (0, 0)),
                pl.BlockSpec((cout_p, 1), lambda j: (0, 0)),
            ],
            out_specs=pl.BlockSpec((cout_p, tile), lambda j: (0, j)),
        ),
        compiler_params=_compiler_params(),
        cost_estimate=pl.CostEstimate(
            flops=2 * cout_p * cin_p * p_pad,
            transcendentals=0,
            bytes_accessed=4 * (cin_p * p_pad + cout_p * cin_p + cout_p + cout_p * p_pad),
        ),
    )(xp, wp, sp)
    return out[:cout, :p]


# ---------------------------------------------------------------------------
# Kernel 2: fused BatchNorm(batch stats, affine=False) + channel mask + activation,
#           folded into a per-row affine: y = act(x * scale + bias).
# ---------------------------------------------------------------------------
def _affine_act_kernel(x_ref, s_ref, b_ref, o_ref, *, act):
    y = x_ref[...] * s_ref[...] + b_ref[...]
    if act == "relu":
        y = jnp.maximum(y, 0.0)
    elif act == "hard_swish":
        y = y * (jnp.clip(y + 3.0, 0.0, 6.0) * (1.0 / 6.0))
    o_ref[...] = y.astype(o_ref.dtype)


def affine_act(x_rp, scale, bias, *, act):
    """Per-row affine + activation on a (R, P) slab; scale/bias are (R, 1) f32."""
    r, p = x_rp.shape
    tile = min(_LANE_TILE, _round_up(p, 128))
    p_pad = _round_up(p, tile)
    xp = jnp.pad(x_rp, ((0, 0), (0, p_pad - p))) if p_pad != p else x_rp

    out = pl.pallas_call(
        functools.partial(_affine_act_kernel, act=act),
        out_shape=jax.ShapeDtypeStruct((r, p_pad), x_rp.dtype),
        grid_spec=pl.GridSpec(
            grid=(p_pad // tile,),
            in_specs=[
                pl.BlockSpec((r, tile), lambda j: (0, j)),
                pl.BlockSpec((r, 1), lambda j: (0, 0)),
                pl.BlockSpec((r, 1), lambda j: (0, 0)),
            ],
            out_specs=pl.BlockSpec((r, tile), lambda j: (0, j)),
        ),
        compiler_params=_compiler_params(),
        cost_estimate=pl.CostEstimate(
            flops=4 * r * p_pad,
            transcendentals=0,
            bytes_accessed=4 * (2 * r * p_pad + 2 * r),
        ),
    )(xp, scale.astype(jnp.float32), bias.astype(jnp.float32))
    return out[:, :p]


# ---------------------------------------------------------------------------
# Kernel 3: depthwise KxK conv (groups == channels), padding k//2.
#           The kernel always computes the stride-1 correlation on pre-padded rows
#           (N*C, H+2p, W+2p); stride 2 is a wrapper-side subsample of that output.
#           (Spatial conv structure forces the small W lane dim here; tensors are tiny.)
# ---------------------------------------------------------------------------
def _dw_conv_kernel(x_ref, w_ref, o_ref, *, k):
    x = x_ref[...]                       # (RT, H+2p, W+2p)
    w = w_ref[...]                       # (RT, k*k), f32
    rt, ho, wo = o_ref.shape
    acc = jnp.zeros((rt, ho, wo), jnp.float32)
    for dy in range(k):                  # static unroll: k*k fused MACs
        for dx in range(k):
            tap = x[:, dy:dy + ho, dx:dx + wo]
            acc = acc + tap * w[:, dy * k + dx].reshape(rt, 1, 1)
    o_ref[...] = acc.astype(o_ref.dtype)


def dw_conv(x, w_dw, *, stride):
    """Depthwise conv: x (N, C, H, W), w_dw (C, k, k), stride in {1, 2}, padding k//2."""
    n, c, h, w = x.shape
    k = w_dw.shape[-1]
    p = k // 2
    rows, rt = n * c, 8
    rows_p = _round_up(rows, rt)
    hp, wp = h + 2 * p, w + 2 * p
    ho, wo = h + 2 * p - k + 1, w + 2 * p - k + 1      # stride-1 output extent

    xr = jnp.pad(x.reshape(rows, h, w), ((0, rows_p - rows), (p, p), (p, p)))
    wr = jnp.pad(jnp.tile(w_dw.reshape(c, k * k), (n, 1)).astype(jnp.float32),
                 ((0, rows_p - rows), (0, 0)))

    out = pl.pallas_call(
        functools.partial(_dw_conv_kernel, k=k),
        out_shape=jax.ShapeDtypeStruct((rows_p, ho, wo), x.dtype),
        grid_spec=pl.GridSpec(
            grid=(rows_p // rt,),
            in_specs=[
                pl.BlockSpec((rt, hp, wp), lambda r: (r, 0, 0)),
                pl.BlockSpec((rt, k * k), lambda r: (r, 0)),
            ],
            out_specs=pl.BlockSpec((rt, ho, wo), lambda r: (r, 0, 0)),
        ),
        compiler_params=_compiler_params(),
        cost_estimate=pl.CostEstimate(
            flops=2 * rows_p * ho * wo * k * k,
            transcendentals=0,
            bytes_accessed=4 * (rows_p * hp * wp + rows_p * k * k + rows_p * ho * wo),
        ),
    )(xr, wr)

    out = out[:rows].reshape(n, c, ho, wo)
    if stride > 1:
        # TODO(synk): strided depthwise conv reuses the stride-1 kernel plus a wrapper subsample.
        out = out[:, :, ::stride, ::stride]
    return out


# ---------------------------------------------------------------------------
# BatchNorm (affine=False, training-mode batch statistics) folded into scale/bias.
# TODO(synk): the per-channel mean/var reductions are tiny and left to XLA in the wrapper.
# ---------------------------------------------------------------------------
def _bn_fold(mean, var, mask):
    inv = jax.lax.rsqrt(var + _BN_EPS) * mask
    return inv, -mean * inv


def _bn_cp(z_cp, mask_c1):
    """Scale/bias for a (C, N*H*W) slab; returns (C, 1), (C, 1)."""
    mean = jnp.mean(z_cp, axis=1, keepdims=True)
    var = jnp.var(z_cp, axis=1, keepdims=True)
    return _bn_fold(mean, var, mask_c1)


def _bn_rows(z_nchw, mask_c):
    """Scale/bias per (N*C) row for an NCHW tensor; returns (N*C, 1), (N*C, 1)."""
    n = z_nchw.shape[0]
    mean = jnp.mean(z_nchw, axis=(0, 2, 3))
    var = jnp.var(z_nchw, axis=(0, 2, 3))
    scale, bias = _bn_fold(mean, var, mask_c)
    return jnp.tile(scale, n)[:, None], jnp.tile(bias, n)[:, None]


# ---------------------------------------------------------------------------
# Layout plumbing (wrapper-side, lane-dense presentation for the kernels).
# ---------------------------------------------------------------------------
def _nchw_to_cp(x):
    n, c, h, w = x.shape
    return jnp.transpose(x, (1, 0, 2, 3)).reshape(c, n * h * w)


def _cp_to_nchw(x_cp, n, h, w):
    c = x_cp.shape[0]
    return jnp.transpose(x_cp.reshape(c, n, h, w), (1, 0, 2, 3))


def channel_shuffle(x):
    # TODO(synk): pure layout op (reshape/transpose/split) left to XLA.
    n, c, h, w = x.shape
    assert c % 4 == 0
    x = x.reshape(n * c // 2, 2, h * w)
    x = jnp.transpose(x, (1, 0, 2))
    x = x.reshape(2, n, c // 2, h, w)
    return x[0], x[1]


# ---------------------------------------------------------------------------
# ShuffleNetCSBlock forward (ShufflenetCS path, affine=False, use_se=False).
# BatchNorm uses training-mode batch statistics (the PyTorch module's default mode).
# ---------------------------------------------------------------------------
def shufflenet_cs_block_forward(x, channel_mask, params, *, ksize, stride, act="relu"):
    # TODO(synk): ShuffleXception block_mode and SEModule (use_se=True) are not implemented.
    assert stride in (1, 2)
    n, _, h, w = x.shape

    if stride == 1:
        x_proj, xb = channel_shuffle(x)
    else:
        x_proj, xb = x, x

    midc = params["w_pw1"].shape[0]
    ouc = params["w_pw2"].shape[0]
    mask_c = channel_mask[:midc].astype(jnp.float32)
    mask_c1 = mask_c[:, None]
    ones_ouc = jnp.ones((ouc, 1), jnp.float32)

    # --- main branch -------------------------------------------------------
    # [0] 1x1 conv + [1] ChannelSelector (fused into the matmul kernel)
    z1 = pw_conv(_nchw_to_cp(xb), params["w_pw1"], mask_c1)            # (midc, N*H*W)
    # [2] BN + [3] ChannelSelector + [4] activation (fused affine kernel)
    s1, b1 = _bn_cp(z1, mask_c1)
    y1 = _cp_to_nchw(affine_act(z1, s1, b1, act=act), n, h, w)         # (N, midc, H, W)

    # [5] depthwise KxK conv (stride)
    z2 = dw_conv(y1, params["w_dw"], stride=stride)                    # (N, midc, Ho, Wo)
    ho, wo = z2.shape[2], z2.shape[3]
    # [6] BN + [7] ChannelSelector (fused affine kernel, no activation)
    s2, b2 = _bn_rows(z2, mask_c)
    y2 = affine_act(z2.reshape(n * midc, ho * wo), s2, b2, act="none").reshape(n, midc, ho, wo)

    # [8] 1x1 conv
    z3 = pw_conv(_nchw_to_cp(y2), params["w_pw2"], ones_ouc)           # (ouc, N*Ho*Wo)
    # [9] BN + [10] activation
    s3, b3 = _bn_cp(z3, ones_ouc)
    y3 = _cp_to_nchw(affine_act(z3, s3, b3, act=act), n, ho, wo)       # (N, ouc, Ho, Wo)

    # --- projection branch -------------------------------------------------
    if stride == 1:
        proj = x_proj
    else:
        projc = x_proj.shape[1]
        ones_pc = jnp.ones((projc,), jnp.float32)
        pz = dw_conv(x_proj, params["w_proj_dw"], stride=stride)
        ph, pw_ = pz.shape[2], pz.shape[3]
        ps, pb = _bn_rows(pz, ones_pc)
        pz = affine_act(pz.reshape(n * projc, ph * pw_), ps, pb, act="none").reshape(n, projc, ph, pw_)
        zp = pw_conv(_nchw_to_cp(pz), params["w_proj_pw"], ones_pc[:, None])
        ps2, pb2 = _bn_cp(zp, ones_pc[:, None])
        proj = _cp_to_nchw(affine_act(zp, ps2, pb2, act=act), n, ph, pw_)

    # TODO(synk): channel concat is a pure layout op left to XLA.
    return jnp.concatenate([proj, y3], axis=1)


# ---------------------------------------------------------------------------
# Pure-JAX/XLA reference (mirrors the PyTorch forward) for a correctness check.
# ---------------------------------------------------------------------------
def _reference_forward(x, channel_mask, params, *, ksize, stride, act="relu"):
    p = ksize // 2
    dn = ("NCHW", "OIHW", "NCHW")
    prec = jax.lax.Precision.HIGHEST

    def bn(z):
        m = jnp.mean(z, axis=(0, 2, 3), keepdims=True)
        v = jnp.var(z, axis=(0, 2, 3), keepdims=True)
        return (z - m) / jnp.sqrt(v + _BN_EPS)

    def act_fn(z):
        if act == "relu":
            return jnp.maximum(z, 0.0)
        return z * jnp.clip(z + 3.0, 0.0, 6.0) / 6.0

    def pw(z, wmat):
        return jax.lax.conv_general_dilated(
            z, wmat[:, :, None, None], (1, 1), "VALID",
            dimension_numbers=dn, precision=prec)

    def dw(z, wd, s):
        return jax.lax.conv_general_dilated(
            z, wd[:, None, :, :], (s, s), [(p, p), (p, p)],
            dimension_numbers=dn, feature_group_count=z.shape[1], precision=prec)

    midc = params["w_pw1"].shape[0]
    m4 = channel_mask[:midc].astype(jnp.float32).reshape(1, midc, 1, 1)

    if stride == 1:
        x_proj, xb = channel_shuffle(x)
    else:
        x_proj, xb = x, x

    z = pw(xb, params["w_pw1"])
    z = z * m4
    z = bn(z) * m4
    z = act_fn(z)
    z = dw(z, params["w_dw"], stride)
    z = bn(z) * m4
    z = pw(z, params["w_pw2"])
    z = act_fn(bn(z))

    if stride == 1:
        proj = x_proj
    else:
        proj = dw(x_proj, params["w_proj_dw"], stride)
        proj = bn(proj)
        proj = pw(proj, params["w_proj_pw"])
        proj = act_fn(bn(proj))

    return jnp.concatenate([proj, z], axis=1)


if __name__ == "__main__":
    key = jax.random.PRNGKey(0)
    k_x, k_pw1, k_dw, k_pw2 = jax.random.split(key, 4)

    # ShuffleNetCSBlock(input_channel=4, output_channel=8, mid_channel=4,
    #                   ksize=3, stride=1, block_mode='ShuffleNetV2', act_name='relu')
    n, input_channel, h, w = 2, 4, 16, 16
    output_channel, mid_channel, ksize, stride = 8, 4, 3, 1
    inc = input_channel // 2              # stride == 1: main branch sees half the channels
    projc = input_channel // 2
    ouc = output_channel - projc

    x = jax.random.normal(k_x, (n, input_channel, h, w), jnp.float32)
    channel_mask = jnp.array([1.0, 1.0, 1.0, 0.0], jnp.float32)   # SPOS channel-search mask
    params = {
        "w_pw1": 0.5 * jax.random.normal(k_pw1, (mid_channel, inc), jnp.float32),
        "w_dw": 0.5 * jax.random.normal(k_dw, (mid_channel, ksize, ksize), jnp.float32),
        "w_pw2": 0.5 * jax.random.normal(k_pw2, (ouc, mid_channel), jnp.float32),
    }

    fwd = jax.jit(functools.partial(shufflenet_cs_block_forward,
                                    ksize=ksize, stride=stride, act="relu"))
    y = fwd(x, channel_mask, params)
    jax.block_until_ready(y)

    y_ref = _reference_forward(x, channel_mask, params, ksize=ksize, stride=stride, act="relu")
    assert y.shape == (n, output_channel, h, w), y.shape
    assert y.dtype == x.dtype
    assert jnp.allclose(y, y_ref, atol=1e-3, rtol=1e-3), float(jnp.max(jnp.abs(y - y_ref)))

    print("KERNEL_OK")
</pallas_src>

<mosaic_0001>
module attributes {stable_mosaic.version = 11 : i64} {
  func.func @_pw_conv_kernel(%arg0: i32, %arg1: memref<8x512xf32, #tpu.memory_space<vmem>>, %arg2: memref<8x8xf32, #tpu.memory_space<vmem>>, %arg3: memref<8x1xf32, #tpu.memory_space<vmem>>, %arg4: memref<8x512xf32, #tpu.memory_space<vmem>>) attributes {dimension_semantics = [#tpu.dimension_semantics<parallel>], iteration_bounds = array<i64: 1>, scalar_prefetch = 0 : i64, scratch_operands = 0 : i64, tpu.core_type = #tpu.core_type<tc>, window_params = [{transform_indices = @transform_0, window_bounds = array<i64: 8, 512>}, {pipeline_mode = #tpu.pipeline_mode<synchronous>, transform_indices = @transform_1, window_bounds = array<i64: 8, 8>}, {pipeline_mode = #tpu.pipeline_mode<synchronous>, transform_indices = @transform_2, window_bounds = array<i64: 8, 1>}, {transform_indices = @transform_3, window_bounds = array<i64: 8, 512>}]} {
    %c0 = arith.constant 0 : index
    %c0_0 = arith.constant 0 : index
    %0 = vector.load %arg2[%c0, %c0_0] : memref<8x8xf32, #tpu.memory_space<vmem>>, vector<8x8xf32>
    %c0_1 = arith.constant 0 : index
    %c0_2 = arith.constant 0 : index
    %1 = vector.load %arg1[%c0_1, %c0_2] : memref<8x512xf32, #tpu.memory_space<vmem>>, vector<8x512xf32>
    %cst = arith.constant dense<0.000000e+00> : vector<8x512xf32>
    %2 = tpu.matmul %0, %1, %cst {dimension_numbers = #tpu.dot_dimension_numbers<[1], [0], [0], [1], [0, 0, 1, 1], [], []>} : vector<8x8xf32>, vector<8x512xf32>, vector<8x512xf32> -> vector<8x512xf32>
    %c0_3 = arith.constant 0 : index
    %c0_4 = arith.constant 0 : index
    %3 = vector.load %arg3[%c0_3, %c0_4] : memref<8x1xf32, #tpu.memory_space<vmem>>, vector<8x1xf32>
    %4 = vector.broadcast %3 : vector<8x1xf32> to vector<8x512xf32>
    %5 = arith.mulf %2, %4 : vector<8x512xf32>
    %c0_5 = arith.constant 0 : index
    %c0_6 = arith.constant 0 : index
    %6 = vector.load %arg4[%c0_5, %c0_6] : memref<8x512xf32, #tpu.memory_space<vmem>>, vector<8x512xf32>
    tpu.vector_store %arg4[%c0_5, %c0_6], %5 {strides = array<i32>} : memref<8x512xf32, #tpu.memory_space<vmem>>, vector<8x512xf32>,
    return
  }
  func.func @transform_0(%arg0: i32) -> (i32, i32) {
    %c0_i32 = arith.constant 0 : i32
    %c0_i32_0 = arith.constant 0 : i32
    return %c0_i32, %arg0 : i32, i32
  }
  func.func @transform_1(%arg0: i32) -> (i32, i32) {
    %c0_i32 = arith.constant 0 : i32
    %c0_i32_0 = arith.constant 0 : i32
    %c0_i32_1 = arith.constant 0 : i32
    return %c0_i32, %c0_i32_0 : i32, i32
  }
  func.func @transform_2(%arg0: i32) -> (i32, i32) {
    %c0_i32 = arith.constant 0 : i32
    %c0_i32_0 = arith.constant 0 : i32
    %c0_i32_1 = arith.constant 0 : i32
    return %c0_i32, %c0_i32_0 : i32, i32
  }
  func.func @transform_3(%arg0: i32) -> (i32, i32) {
    %c0_i32 = arith.constant 0 : i32
    %c0_i32_0 = arith.constant 0 : i32
    return %c0_i32, %arg0 : i32, i32
  }
}

module attributes {stable_mosaic.version = 11 : i64} {
  func.func @_affine_act_kernel(%arg0: i32, %arg1: memref<4x512xf32, #tpu.memory_space<vmem>>, %arg2: memref<4x1xf32, #tpu.memory_space<vmem>>, %arg3: memref<4x1xf32, #tpu.memory_space<vmem>>, %arg4: memref<4x512xf32, #tpu.memory_space<vmem>>) attributes {dimension_semantics = [#tpu.dimension_semantics<parallel>], iteration_bounds = array<i64: 1>, scalar_prefetch = 0 : i64, scratch_operands = 0 : i64, tpu.core_type = #tpu.core_type<tc>, window_params = [{transform_indices = @transform_0, window_bounds = array<i64: 4, 512>}, {pipeline_mode = #tpu.pipeline_mode<synchronous>, transform_indices = @transform_1, window_bounds = array<i64: 4, 1>}, {pipeline_mode = #tpu.pipeline_mode<synchronous>, transform_indices = @transform_2, window_bounds = array<i64: 4, 1>}, {transform_indices = @transform_3, window_bounds = array<i64: 4, 512>}]} {
    %c0 = arith.constant 0 : index
    %c0_0 = arith.constant 0 : index
    %0 = vector.load %arg1[%c0, %c0_0] : memref<4x512xf32, #tpu.memory_space<vmem>>, vector<4x512xf32>
    %c0_1 = arith.constant 0 : index
    %c0_2 = arith.constant 0 : index
    %1 = vector.load %arg2[%c0_1, %c0_2] : memref<4x1xf32, #tpu.memory_space<vmem>>, vector<4x1xf32>
    %2 = vector.broadcast %1 : vector<4x1xf32> to vector<4x512xf32>
    %3 = arith.mulf %0, %2 : vector<4x512xf32>
    %c0_3 = arith.constant 0 : index
    %c0_4 = arith.constant 0 : index
    %4 = vector.load %arg3[%c0_3, %c0_4] : memref<4x1xf32, #tpu.memory_space<vmem>>, vector<4x1xf32>
    %5 = vector.broadcast %4 : vector<4x1xf32> to vector<4x512xf32>
    %6 = arith.addf %3, %5 : vector<4x512xf32>
    %cst = arith.constant 0.000000e+00 : f32
    %7 = vector.broadcast %cst : f32 to vector<4x512xf32>
    %8 = arith.maximumf %6, %7 : vector<4x512xf32>
    %c0_5 = arith.constant 0 : index
    %c0_6 = arith.constant 0 : index
    %9 = vector.load %arg4[%c0_5, %c0_6] : memref<4x512xf32, #tpu.memory_space<vmem>>, vector<4x512xf32>
    tpu.vector_store %arg4[%c0_5, %c0_6], %8 {strides = array<i32>} : memref<4x512xf32, #tpu.memory_space<vmem>>, vector<4x512xf32>,
    return
  }
  func.func @transform_0(%arg0: i32) -> (i32, i32) {
    %c0_i32 = arith.constant 0 : i32
    %c0_i32_0 = arith.constant 0 : i32
    return %c0_i32, %arg0 : i32, i32
  }
  func.func @transform_1(%arg0: i32) -> (i32, i32) {
    %c0_i32 = arith.constant 0 : i32
    %c0_i32_0 = arith.constant 0 : i32
    %c0_i32_1 = arith.constant 0 : i32
    return %c0_i32, %c0_i32_0 : i32, i32
  }
  func.func @transform_2(%arg0: i32) -> (i32, i32) {
    %c0_i32 = arith.constant 0 : i32
    %c0_i32_0 = arith.constant 0 : i32
    %c0_i32_1 = arith.constant 0 : i32
    return %c0_i32, %c0_i32_0 : i32, i32
  }
  func.func @transform_3(%arg0: i32) -> (i32, i32) {
    %c0_i32 = arith.constant 0 : i32
    %c0_i32_0 = arith.constant 0 : i32
    return %c0_i32, %arg0 : i32, i32
  }
}

module attributes {stable_mosaic.version = 11 : i64} {
  func.func @_dw_conv_kernel(%arg0: i32, %arg1: memref<8x18x18xf32, #tpu.memory_space<vmem>>, %arg2: memref<8x9xf32, #tpu.memory_space<vmem>>, %arg3: memref<8x16x16xf32, #tpu.memory_space<vmem>>) attributes {dimension_semantics = [#tpu.dimension_semantics<parallel>], iteration_bounds = array<i64: 1>, scalar_prefetch = 0 : i64, scratch_operands = 0 : i64, tpu.core_type = #tpu.core_type<tc>, window_params = [{transform_indices = @transform_0, window_bounds = array<i64: 8, 18, 18>}, {transform_indices = @transform_1, window_bounds = array<i64: 8, 9>}, {transform_indices = @transform_2, window_bounds = array<i64: 8, 16, 16>}]} {
    %c0 = arith.constant 0 : index
    %c0_0 = arith.constant 0 : index
    %c0_1 = arith.constant 0 : index
    %0 = vector.load %arg1[%c0, %c0_0, %c0_1] : memref<8x18x18xf32, #tpu.memory_space<vmem>>, vector<8x18x18xf32>
    %c0_2 = arith.constant 0 : index
    %c0_3 = arith.constant 0 : index
    %1 = vector.load %arg2[%c0_2, %c0_3] : memref<8x9xf32, #tpu.memory_space<vmem>>, vector<8x9xf32>
    %cst = arith.constant 0.000000e+00 : f32
    %2 = vector.broadcast %cst : f32 to vector<8x16x16xf32>
    %3 = vector.extract_strided_slice %0 {offsets = [0, 0, 0], sizes = [8, 16, 16], strides = [1, 1, 1]} : vector<8x18x18xf32> to vector<8x16x16xf32>
    %4 = vector.extract_strided_slice %1 {offsets = [0, 0], sizes = [8, 1], strides = [1, 1]} : vector<8x9xf32> to vector<8x1xf32>
    %5 = vector.shape_cast %4 : vector<8x1xf32> to vector<8xf32>
    %6 = vector.shape_cast %5 : vector<8xf32> to vector<8x1x1xf32>
    %7 = vector.broadcast %6 : vector<8x1x1xf32> to vector<8x16x16xf32>
    %8 = arith.mulf %3, %7 : vector<8x16x16xf32>
    %9 = arith.addf %2, %8 : vector<8x16x16xf32>
    %10 = vector.extract_strided_slice %0 {offsets = [0, 0, 1], sizes = [8, 16, 16], strides = [1, 1, 1]} : vector<8x18x18xf32> to vector<8x16x16xf32>
    %11 = vector.extract_strided_slice %1 {offsets = [0, 1], sizes = [8, 1], strides = [1, 1]} : vector<8x9xf32> to vector<8x1xf32>
    %12 = vector.shape_cast %11 : vector<8x1xf32> to vector<8xf32>
    %13 = vector.shape_cast %12 : vector<8xf32> to vector<8x1x1xf32>
    %14 = vector.broadcast %13 : vector<8x1x1xf32> to vector<8x16x16xf32>
    %15 = arith.mulf %10, %14 : vector<8x16x16xf32>
    %16 = arith.addf %9, %15 : vector<8x16x16xf32>
    %17 = vector.extract_strided_slice %0 {offsets = [0, 0, 2], sizes = [8, 16, 16], strides = [1, 1, 1]} : vector<8x18x18xf32> to vector<8x16x16xf32>
    %18 = vector.extract_strided_slice %1 {offsets = [0, 2], sizes = [8, 1], strides = [1, 1]} : vector<8x9xf32> to vector<8x1xf32>
    %19 = vector.shape_cast %18 : vector<8x1xf32> to vector<8xf32>
    %20 = vector.shape_cast %19 : vector<8xf32> to vector<8x1x1xf32>
    %21 = vector.broadcast %20 : vector<8x1x1xf32> to vector<8x16x16xf32>
    %22 = arith.mulf %17, %21 : vector<8x16x16xf32>
    %23 = arith.addf %16, %22 : vector<8x16x16xf32>
    %24 = vector.extract_strided_slice %0 {offsets = [0, 1, 0], sizes = [8, 16, 16], strides = [1, 1, 1]} : vector<8x18x18xf32> to vector<8x16x16xf32>
    %25 = vector.extract_strided_slice %1 {offsets = [0, 3], sizes = [8, 1], strides = [1, 1]} : vector<8x9xf32> to vector<8x1xf32>
    %26 = vector.shape_cast %25 : vector<8x1xf32> to vector<8xf32>
    %27 = vector.shape_cast %26 : vector<8xf32> to vector<8x1x1xf32>
    %28 = vector.broadcast %27 : vector<8x1x1xf32> to vector<8x16x16xf32>
    %29 = arith.mulf %24, %28 : vector<8x16x16xf32>
    %30 = arith.addf %23, %29 : vector<8x16x16xf32>
    %31 = vector.extract_strided_slice %0 {offsets = [0, 1, 1], sizes = [8, 16, 16], strides = [1, 1, 1]} : vector<8x18x18xf32> to vector<8x16x16xf32>
    %32 = vector.extract_strided_slice %1 {offsets = [0, 4], sizes = [8, 1], strides = [1, 1]} : vector<8x9xf32> to vector<8x1xf32>
    %33 = vector.shape_cast %32 : vector<8x1xf32> to vector<8xf32>
    %34 = vector.shape_cast %33 : vector<8xf32> to vector<8x1x1xf32>
    %35 = vector.broadcast %34 : vector<8x1x1xf32> to vector<8x16x16xf32>
    %36 = arith.mulf %31, %35 : vector<8x16x16xf32>
    %37 = arith.addf %30, %36 : vector<8x16x16xf32>
    %38 = vector.extract_strided_slice %0 {offsets = [0, 1, 2], sizes = [8, 16, 16], strides = [1, 1, 1]} : vector<8x18x18xf32> to vector<8x16x16xf32>
    %39 = vector.extract_strided_slice %1 {offsets = [0, 5], sizes = [8, 1], strides = [1, 1]} : vector<8x9xf32> to vector<8x1xf32>
    %40 = vector.shape_cast %39 : vector<8x1xf32> to vector<8xf32>
    %41 = vector.shape_cast %40 : vector<8xf32> to vector<8x1x1xf32>
    %42 = vector.broadcast %41 : vector<8x1x1xf32> to vector<8x16x16xf32>
    %43 = arith.mulf %38, %42 : vector<8x16x16xf32>
    %44 = arith.addf %37, %43 : vector<8x16x16xf32>
    %45 = vector.extract_strided_slice %0 {offsets = [0, 2, 0], sizes = [8, 16, 16], strides = [1, 1, 1]} : vector<8x18x18xf32> to vector<8x16x16xf32>
    %46 = vector.extract_strided_slice %1 {offsets = [0, 6], sizes = [8, 1], strides = [1, 1]} : vector<8x9xf32> to vector<8x1xf32>
    %47 = vector.shape_cast %46 : vector<8x1xf32> to vector<8xf32>
    %48 = vector.shape_cast %47 : vector<8xf32> to vector<8x1x1xf32>
    %49 = vector.broadcast %48 : vector<8x1x1xf32> to vector<8x16x16xf32>
    %50 = arith.mulf %45, %49 : vector<8x16x16xf32>
    %51 = arith.addf %44, %50 : vector<8x16x16xf32>
    %52 = vector.extract_strided_slice %0 {offsets = [0, 2, 1], sizes = [8, 16, 16], strides = [1, 1, 1]} : vector<8x18x18xf32> to vector<8x16x16xf32>
    %53 = vector.extract_strided_slice %1 {offsets = [0, 7], sizes = [8, 1], strides = [1, 1]} : vector<8x9xf32> to vector<8x1xf32>
    %54 = vector.shape_cast %53 : vector<8x1xf32> to vector<8xf32>
    %55 = vector.shape_cast %54 : vector<8xf32> to vector<8x1x1xf32>
    %56 = vector.broadcast %55 : vector<8x1x1xf32> to vector<8x16x16xf32>
    %57 = arith.mulf %52, %56 : vector<8x16x16xf32>
    %58 = arith.addf %51, %57 : vector<8x16x16xf32>
    %59 = vector.extract_strided_slice %0 {offsets = [0, 2, 2], sizes = [8, 16, 16], strides = [1, 1, 1]} : vector<8x18x18xf32> to vector<8x16x16xf32>
    %60 = vector.extract_strided_slice %1 {offsets = [0, 8], sizes = [8, 1], strides = [1, 1]} : vector<8x9xf32> to vector<8x1xf32>
    %61 = vector.shape_cast %60 : vector<8x1xf32> to vector<8xf32>
    %62 = vector.shape_cast %61 : vector<8xf32> to vector<8x1x1xf32>
    %63 = vector.broadcast %62 : vector<8x1x1xf32> to vector<8x16x16xf32>
    %64 = arith.mulf %59, %63 : vector<8x16x16xf32>
    %65 = arith.addf %58, %64 : vector<8x16x16xf32>
    %c0_4 = arith.constant 0 : index
    %c0_5 = arith.constant 0 : index
    %c0_6 = arith.constant 0 : index
    %66 = vector.load %arg3[%c0_4, %c0_5, %c0_6] : memref<8x16x16xf32, #tpu.memory_space<vmem>>, vector<8x16x16xf32>
    tpu.vector_store %arg3[%c0_4, %c0_5, %c0_6], %65 {strides = array<i32>} : memref<8x16x16xf32, #tpu.memory_space<vmem>>, vector<8x16x16xf32>,
    return
  }
  func.func @transform_0(%arg0: i32) -> (i32, i32, i32) {
    %c0_i32 = arith.constant 0 : i32
    %c0_i32_0 = arith.constant 0 : i32
    %c0_i32_1 = arith.constant 0 : i32
    return %arg0, %c0_i32, %c0_i32_0 : i32, i32, i32
  }
  func.func @transform_1(%arg0: i32) -> (i32, i32) {
    %c0_i32 = arith.constant 0 : i32
    %c0_i32_0 = arith.constant 0 : i32
    return %arg0, %c0_i32 : i32, i32
  }
  func.func @transform_2(%arg0: i32) -> (i32, i32, i32) {
    %c0_i32 = arith.constant 0 : i32
    %c0_i32_0 = arith.constant 0 : i32
    %c0_i32_1 = arith.constant 0 : i32
    return %arg0, %c0_i32, %c0_i32_0 : i32, i32, i32
  }
}

module attributes {stable_mosaic.version = 11 : i64} {
  func.func @_affine_act_kernel(%arg0: i32, %arg1: memref<8x256xf32, #tpu.memory_space<vmem>>, %arg2: memref<8x1xf32, #tpu.memory_space<vmem>>, %arg3: memref<8x1xf32, #tpu.memory_space<vmem>>, %arg4: memref<8x256xf32, #tpu.memory_space<vmem>>) attributes {dimension_semantics = [#tpu.dimension_semantics<parallel>], iteration_bounds = array<i64: 1>, scalar_prefetch = 0 : i64, scratch_operands = 0 : i64, tpu.core_type = #tpu.core_type<tc>, window_params = [{transform_indices = @transform_0, window_bounds = array<i64: 8, 256>}, {pipeline_mode = #tpu.pipeline_mode<synchronous>, transform_indices = @transform_1, window_bounds = array<i64: 8, 1>}, {pipeline_mode = #tpu.pipeline_mode<synchronous>, transform_indices = @transform_2, window_bounds = array<i64: 8, 1>}, {transform_indices = @transform_3, window_bounds = array<i64: 8, 256>}]} {
    %c0 = arith.constant 0 : index
    %c0_0 = arith.constant 0 : index
    %0 = vector.load %arg1[%c0, %c0_0] : memref<8x256xf32, #tpu.memory_space<vmem>>, vector<8x256xf32>
    %c0_1 = arith.constant 0 : index
    %c0_2 = arith.constant 0 : index
    %1 = vector.load %arg2[%c0_1, %c0_2] : memref<8x1xf32, #tpu.memory_space<vmem>>, vector<8x1xf32>
    %2 = vector.broadcast %1 : vector<8x1xf32> to vector<8x256xf32>
    %3 = arith.mulf %0, %2 : vector<8x256xf32>
    %c0_3 = arith.constant 0 : index
    %c0_4 = arith.constant 0 : index
    %4 = vector.load %arg3[%c0_3, %c0_4] : memref<8x1xf32, #tpu.memory_space<vmem>>, vector<8x1xf32>
    %5 = vector.broadcast %4 : vector<8x1xf32> to vector<8x256xf32>
    %6 = arith.addf %3, %5 : vector<8x256xf32>
    %c0_5 = arith.constant 0 : index
    %c0_6 = arith.constant 0 : index
    %7 = vector.load %arg4[%c0_5, %c0_6] : memref<8x256xf32, #tpu.memory_space<vmem>>, vector<8x256xf32>
    tpu.vector_store %arg4[%c0_5, %c0_6], %6 {strides = array<i32>} : memref<8x256xf32, #tpu.memory_space<vmem>>, vector<8x256xf32>,
    return
  }
  func.func @transform_0(%arg0: i32) -> (i32, i32) {
    %c0_i32 = arith.constant 0 : i32
    %c0_i32_0 = arith.constant 0 : i32
    return %c0_i32, %arg0 : i32, i32
  }
  func.func @transform_1(%arg0: i32) -> (i32, i32) {
    %c0_i32 = arith.constant 0 : i32
    %c0_i32_0 = arith.constant 0 : i32
    %c0_i32_1 = arith.constant 0 : i32
    return %c0_i32, %c0_i32_0 : i32, i32
  }
  func.func @transform_2(%arg0: i32) -> (i32, i32) {
    %c0_i32 = arith.constant 0 : i32
    %c0_i32_0 = arith.constant 0 : i32
    %c0_i32_1 = arith.constant 0 : i32
    return %c0_i32, %c0_i32_0 : i32, i32
  }
  func.func @transform_3(%arg0: i32) -> (i32, i32) {
    %c0_i32 = arith.constant 0 : i32
    %c0_i32_0 = arith.constant 0 : i32
    return %c0_i32, %arg0 : i32, i32
  }
}

module attributes {stable_mosaic.version = 11 : i64} {
  func.func @_affine_act_kernel(%arg0: i32, %arg1: memref<6x512xf32, #tpu.memory_space<vmem>>, %arg2: memref<6x1xf32, #tpu.memory_space<vmem>>, %arg3: memref<6x1xf32, #tpu.memory_space<vmem>>, %arg4: memref<6x512xf32, #tpu.memory_space<vmem>>) attributes {dimension_semantics = [#tpu.dimension_semantics<parallel>], iteration_bounds = array<i64: 1>, scalar_prefetch = 0 : i64, scratch_operands = 0 : i64, tpu.core_type = #tpu.core_type<tc>, window_params = [{transform_indices = @transform_0, window_bounds = array<i64: 6, 512>}, {pipeline_mode = #tpu.pipeline_mode<synchronous>, transform_indices = @transform_1, window_bounds = array<i64: 6, 1>}, {pipeline_mode = #tpu.pipeline_mode<synchronous>, transform_indices = @transform_2, window_bounds = array<i64: 6, 1>}, {transform_indices = @transform_3, window_bounds = array<i64: 6, 512>}]} {
    %c0 = arith.constant 0 : index
    %c0_0 = arith.constant 0 : index
    %0 = vector.load %arg1[%c0, %c0_0] : memref<6x512xf32, #tpu.memory_space<vmem>>, vector<6x512xf32>
    %c0_1 = arith.constant 0 : index
    %c0_2 = arith.constant 0 : index
    %1 = vector.load %arg2[%c0_1, %c0_2] : memref<6x1xf32, #tpu.memory_space<vmem>>, vector<6x1xf32>
    %2 = vector.broadcast %1 : vector<6x1xf32> to vector<6x512xf32>
    %3 = arith.mulf %0, %2 : vector<6x512xf32>
    %c0_3 = arith.constant 0 : index
    %c0_4 = arith.constant 0 : index
    %4 = vector.load %arg3[%c0_3, %c0_4] : memref<6x1xf32, #tpu.memory_space<vmem>>, vector<6x1xf32>
    %5 = vector.broadcast %4 : vector<6x1xf32> to vector<6x512xf32>
    %6 = arith.addf %3, %5 : vector<6x512xf32>
    %cst = arith.constant 0.000000e+00 : f32
    %7 = vector.broadcast %cst : f32 to vector<6x512xf32>
    %8 = arith.maximumf %6, %7 : vector<6x512xf32>
    %c0_5 = arith.constant 0 : index
    %c0_6 = arith.constant 0 : index
    %9 = vector.load %arg4[%c0_5, %c0_6] : memref<6x512xf32, #tpu.memory_space<vmem>>, vector<6x512xf32>
    tpu.vector_store %arg4[%c0_5, %c0_6], %8 {strides = array<i32>} : memref<6x512xf32, #tpu.memory_space<vmem>>, vector<6x512xf32>,
    return
  }
  func.func @transform_0(%arg0: i32) -> (i32, i32) {
    %c0_i32 = arith.constant 0 : i32
    %c0_i32_0 = arith.constant 0 : i32
    return %c0_i32, %arg0 : i32, i32
  }
  func.func @transform_1(%arg0: i32) -> (i32, i32) {
    %c0_i32 = arith.constant 0 : i32
    %c0_i32_0 = arith.constant 0 : i32
    %c0_i32_1 = arith.constant 0 : i32
    return %c0_i32, %c0_i32_0 : i32, i32
  }
  func.func @transform_2(%arg0: i32) -> (i32, i32) {
    %c0_i32 = arith.constant 0 : i32
    %c0_i32_0 = arith.constant 0 : i32
    %c0_i32_1 = arith.constant 0 : i32
    return %c0_i32, %c0_i32_0 : i32, i32
  }
  func.func @transform_3(%arg0: i32) -> (i32, i32) {
    %c0_i32 = arith.constant 0 : i32
    %c0_i32_0 = arith.constant 0 : i32
    return %c0_i32, %arg0 : i32, i32
  }
}

</mosaic_0001>

<llo_original>
// kernel: squeeze.2
$region0: #{squeeze.2}
  %s0 = inlined_call_operand.vmem [shape: f32[1,4,256], index: 0, kind: input, shape index: {}]
  %s1 = inlined_call_operand.vmem [shape: f32[2,2,16,16], index: 1, kind: output, shape index: {}]
  $region1: #{squeeze.2} parent=0
    #allocation0 [shape = 'u8[8192]{0}', space=vmem, size = 0x2000, scoped, tag = 'scoped mem for input reshape']
    %s3 = ssub.s32 16, 1
    %s4 = scalar_lea.vmem %s0, 4
    %v5 = vld [vmem:[%s4] sm:%s3]
    %s6 = scalar_lea.vmem [#allocation0], 8
    %7 = vst [vmem:[%s6] sm:%s3] %v5
    %v8 = vld [vmem:[%s0] sm:%s3]
    %9 = vst [vmem:[#allocation0] sm:%s3] %v8
    %v10 = vld [vmem:[#allocation0] sm:$0xf]
    %vm11 = vcmask 130048
    %12 = vst.msk [vmem:[%s1] ss:$16 sm:$0x3] %vm11, %v10
    %13 = vst.msk [vmem:[%s1] ss:$16 sm:$0xc] %vm11, %v10
    %s14 = scalar_lea.vmem [#allocation0], 8
    %v15 = vld [vmem:[%s14] sm:$0xf]
    %vm16 = vcmask 130048
    %s17 = scalar_lea.vmem %s1, 8
    %18 = vst.msk [vmem:[%s17] ss:$16 sm:$0x3] %vm16, %v15
    %s19 = scalar_lea.vmem %s1, 8
    %20 = vst.msk [vmem:[%s19] ss:$16 sm:$0xc] %vm16, %v15
    %v21 = vld.sshfl [vmem:[#allocation0] sm:$0xff pattern:$0xb3a29180]
    %22 = vrot.lane.b32.xlu0 %v21, 112
    %v23 = vpop.permute.xlu0 %22
    %vm24 = vcmask 130048
    %s25 = scalar_lea.vmem %s1, 1
    %26 = vst.msk [vmem:[%s25] ss:$8 sm:$0xf] %vm24, %v23
    %s27 = scalar_lea.vmem %s1, 1
    %28 = vst.msk [vmem:[%s27] ss:$8 sm:$0xf0] %vm24, %v23
    %v29 = vld.sshfl [vmem:[#allocation0] sm:$0xff pattern:$0xb3a29180]
    %30 = vrot.lane.b32.xlu0 %v29, 96
    %v31 = vpop.permute.xlu0 %30
    %vm32 = vcmask 130048
    %s33 = scalar_lea.vmem %s1, 2
    %34 = vst.msk [vmem:[%s33] ss:$8 sm:$0xf] %vm32, %v31
    %s35 = scalar_lea.vmem %s1, 2
    %36 = vst.msk [vmem:[%s35] ss:$8 sm:$0xf0] %vm32, %v31
    %v37 = vld.sshfl [vmem:[#allocation0] sm:$0xff pattern:$0xb3a29180]
    %38 = vrot.lane.b32.xlu0 %v37, 80
    %v39 = vpop.permute.xlu0 %38
    %vm40 = vcmask 130048
    %s41 = scalar_lea.vmem %s1, 3
    %42 = vst.msk [vmem:[%s41] ss:$8 sm:$0xf] %vm40, %v39
    %s43 = scalar_lea.vmem %s1, 3
    %44 = vst.msk [vmem:[%s43] ss:$8 sm:$0xf0] %vm40, %v39
    %v45 = vld.sshfl [vmem:[#allocation0] sm:$0xff pattern:$0xb3a29180]
    %46 = vrot.lane.b32.xlu0 %v45, 64
    %v47 = vpop.permute.xlu0 %46
    %vm48 = vcmask 130048
    %s49 = scalar_lea.vmem %s1, 4
    %50 = vst.msk [vmem:[%s49] ss:$8 sm:$0xf] %vm48, %v47
    %s51 = scalar_lea.vmem %s1, 4
    %52 = vst.msk [vmem:[%s51] ss:$8 sm:$0xf0] %vm48, %v47
    %v53 = vld.sshfl [vmem:[#allocation0] sm:$0xff pattern:$0xb3a29180]
    %54 = vrot.lane.b32.xlu0 %v53, 48
    %v55 = vpop.permute.xlu0 %54
    %vm56 = vcmask 130048
    %s57 = scalar_lea.vmem %s1, 5
    %58 = vst.msk [vmem:[%s57] ss:$8 sm:$0xf] %vm56, %v55
    %s59 = scalar_lea.vmem %s1, 5
    %60 = vst.msk [vmem:[%s59] ss:$8 sm:$0xf0] %vm56, %v55
    %v61 = vld.sshfl [vmem:[#allocation0] sm:$0xff pattern:$0xb3a29180]
    %62 = vrot.lane.b32.xlu0 %v61, 32
    %v63 = vpop.permute.xlu0 %62
    %vm64 = vcmask 130048
    %s65 = scalar_lea.vmem %s1, 6
    %66 = vst.msk [vmem:[%s65] ss:$8 sm:$0xf] %vm64, %v63
    %s67 = scalar_lea.vmem %s1, 6
    %68 = vst.msk [vmem:[%s67] ss:$8 sm:$0xf0] %vm64, %v63
    %v69 = vld.sshfl [vmem:[#allocation0] sm:$0xff pattern:$0xb3a29180]
    %70 = vrot.lane.b32.xlu0 %v69, 16
    %v71 = vpop.permute.xlu0 %70
    %vm72 = vcmask 130048
    %s73 = scalar_lea.vmem %s1, 7
    %74 = vst.msk [vmem:[%s73] ss:$8 sm:$0xf] %vm72, %v71
    %s75 = scalar_lea.vmem %s1, 7
    %76 = vst.msk [vmem:[%s75] ss:$8 sm:$0xf0] %vm72, %v71

// kernel: tile.0
$region0: #{tile.0}
  %s0 = inlined_call_operand.vmem [shape: f32[2,4], index: 0, kind: input, shape index: {}]
  %s1 = inlined_call_operand.vmem [shape: f32[8,1], index: 1, kind: output, shape index: {}]
  $region1: #{tile.0} parent=0
    #allocation0 [shape = 'u8[4096]{0}', space=vmem, size = 0x1000, scoped, tag = 'scoped mem for input reshape']
    %s3 = ssub.s32 4, 1
    %v4 = vld [vmem:[%s0] sm:%s3]
    %5 = vst [vmem:[#allocation0] sm:%s3] %v4
    %v6 = vld [vmem:[#allocation0] sm:$0x3]
    %vm7 = vcmask 7168
    %8 = vst.msk [vmem:[%s1] ss:$4 sm:$0x3] %vm7, %v6
    %v9 = vld [vmem:[#allocation0] sm:$0x3]
    %10 = vrot.lane.b32.xlu0 %v9, 127
    %v11 = vpop.permute.xlu0 %10
    %vm12 = vcmask 7168
    %s13 = scalar_lea.vmem %s1, 1
    %14 = vst.msk [vmem:[%s13] ss:$4 sm:$0x3] %vm12, %v11
    %v15 = vld [vmem:[#allocation0] sm:$0x3]
    %16 = vrot.lane.b32.xlu0 %v15, 126
    %v17 = vpop.permute.xlu0 %16
    %vm18 = vcmask 7168
    %s19 = scalar_lea.vmem %s1, 2
    %20 = vst.msk [vmem:[%s19] ss:$4 sm:$0x3] %vm18, %v17
    %v21 = vld [vmem:[#allocation0] sm:$0x3]
    %22 = vrot.lane.b32.xlu0 %v21, 125
    %v23 = vpop.permute.xlu0 %22
    %vm24 = vcmask 7168
    %s25 = scalar_lea.vmem %s1, 3
    %26 = vst.msk [vmem:[%s25] ss:$4 sm:$0x3] %vm24, %v23

// kernel: shufflenet_cs_block_forward.6
$region0: #{shufflenet_cs_block_forward.6}
  #allocation0 [shape = 'u32[]', space=smem, size = 0x4, offset = 0x4, fixed_abs, tag = 'smem constant byte address 0x4 - core index']
  #allocation1 [shape = 'u32[72,128]{1,0:T(1,128)}', space=vmem, size = 0x9000, scoped, tag = 'internal scratch']
  %s0 = inlined_call_operand.vmem [shape: f32[8,512], index: 0, kind: input, shape index: {}]
  %s1 = inlined_call_operand.vmem [shape: f32[8,8], index: 1, kind: input, shape index: {}]
  %s2 = inlined_call_operand.vmem [shape: f32[8,1], index: 2, kind: input, shape index: {}]
  %s3 = inlined_call_operand.vmem [shape: f32[8,512], index: 3, kind: output, shape index: {}]
  %s4 = sld [smem:[#allocation0]]
  $region22: #{shufflenet_cs_block_forward.6} parent=0
    _
  %s6 = ssub.s32 1, %s4
  %s7 = scalar_select 0, %s6, %s4
  // Predicated region
  $region2: #{shufflenet_cs_block_forward.6} parent=0 // pred_check
    _
  $region3: #{shufflenet_cs_block_forward.6} parent=0 // pred_check_branch
    %9 = sbr.rel (0) target = $region5
  $region4: #{shufflenet_cs_block_forward.6} parent=0 // pred_region
    _
  $region5: #{shufflenet_cs_block_forward.6} parent=0 // pred_fallthru
    _
  // Predicated region
  $region6: #{shufflenet_cs_block_forward.6} parent=0 // pred_check
    _
  $region7: #{shufflenet_cs_block_forward.6} parent=0 // pred_check_branch
    %11 = sbr.rel (0) target = $region9
  $region8: #{shufflenet_cs_block_forward.6} parent=0 // pred_region
    _
  $region9: #{shufflenet_cs_block_forward.6} parent=0 // pred_fallthru
    _
  // Predicated region
  $region10: #{shufflenet_cs_block_forward.6} parent=0 // pred_check
    _
  $region11: #{shufflenet_cs_block_forward.6} parent=0 // pred_check_branch
    %13 = sbr.rel (0) target = $region13
  $region12: #{shufflenet_cs_block_forward.6} parent=0 // pred_region
    _
  $region13: #{shufflenet_cs_block_forward.6} parent=0 // pred_fallthru
    _
  %v14 = vld [vmem:[%s1] sm:$0xff]
  %v15 = vld [vmem:[%s0] sm:$0xff]
  %v16 = vld [vmem:[%s0 + $0x8] sm:$0xff]
  %v17 = vld [vmem:[%s0 + $0x10] sm:$0xff]
  %v18 = vld [vmem:[%s0 + $0x18] sm:$0xff]
  %vm19 = vcmask 64512
  %v21 = vsel %vm19, %v14, 0
  %23 = vmatpush.msra.mxu0 0.0
  %24 = vmatpush.msra.mxu0 0.0
  %25 = vmatpush.msra.mxu0 0.0
  %26 = vmatpush.msra.mxu0 0.0
  %27 = vmatpush.msra.mxu0 0.0
  %28 = vmatpush.msra.mxu0 0.0
  %29 = vmatpush.msra.mxu0 0.0
  %30 = vmatpush.msra.mxu0 0.0
  %31 = vmatpush.msra.mxu0 0.0
  %32 = vmatpush.msra.mxu0 0.0
  %33 = vmatpush.msra.mxu0 0.0
  %34 = vmatpush.msra.mxu0 0.0
  %35 = vmatpush.msra.mxu0 0.0
  %36 = vmatpush.msra.mxu0 0.0
  %37 = vmatpush.msra.mxu0 0.0
  %38 = vmatpush.msra.mxu0 %v15
  %39 = vmatmul.f32.gmra.mxu0 %v21
  %v40 = vpop.f32.mrf.mxu0
  %v41 = vadd.f32 0.0, %v40
  %42 = vdwg.mxu0
  %43 = vmatpush.msra.mxu0 0.0
  %44 = vmatpush.msra.mxu0 0.0
  %45 = vmatpush.msra.mxu0 0.0
  %46 = vmatpush.msra.mxu0 0.0
  %47 = vmatpush.msra.mxu0 0.0
  %48 = vmatpush.msra.mxu0 0.0
  %49 = vmatpush.msra.mxu0 0.0
  %50 = vmatpush.msra.mxu0 0.0
  %51 = vmatpush.msra.mxu0 0.0
  %52 = vmatpush.msra.mxu0 0.0
  %53 = vmatpush.msra.mxu0 0.0
  %54 = vmatpush.msra.mxu0 0.0
  %55 = vmatpush.msra.mxu0 0.0
  %56 = vmatpush.msra.mxu0 0.0
  %57 = vmatpush.msra.mxu0 0.0
  %58 = vmatpush.msra.mxu0 %v16
  %59 = vmatmul.f32.gmra.mxu0 %v21
  %v60 = vpop.f32.mrf.mxu0
  %v61 = vadd.f32 0.0, %v60
  %62 = vdwg.mxu0
  %63 = vmatpush.msra.mxu0 0.0
  %64 = vmatpush.msra.mxu0 0.0
  %65 = vmatpush.msra.mxu0 0.0
  %66 = vmatpush.msra.mxu0 0.0
  %67 = vmatpush.msra.mxu0 0.0
  %68 = vmatpush.msra.mxu0 0.0
  %69 = vmatpush.msra.mxu0 0.0
  %70 = vmatpush.msra.mxu0 0.0
  %71 = vmatpush.msra.mxu0 0.0
  %72 = vmatpush.msra.mxu0 0.0
  %73 = vmatpush.msra.mxu0 0.0
  %74 = vmatpush.msra.mxu0 0.0
  %75 = vmatpush.msra.mxu0 0.0
  %76 = vmatpush.msra.mxu0 0.0
  %77 = vmatpush.msra.mxu0 0.0
  %78 = vmatpush.msra.mxu0 %v17
  %79 = vmatmul.f32.gmra.mxu0 %v21
  %v80 = vpop.f32.mrf.mxu0
  %v81 = vadd.f32 0.0, %v80
  %82 = vdwg.mxu0
  %83 = vmatpush.msra.mxu0 0.0
  %84 = vmatpush.msra.mxu0 0.0
  %85 = vmatpush.msra.mxu0 0.0
  %86 = vmatpush.msra.mxu0 0.0
  %87 = vmatpush.msra.mxu0 0.0
  %88 = vmatpush.msra.mxu0 0.0
  %89 = vmatpush.msra.mxu0 0.0
  %90 = vmatpush.msra.mxu0 0.0
  %91 = vmatpush.msra.mxu0 0.0
  %92 = vmatpush.msra.mxu0 0.0
  %93 = vmatpush.msra.mxu0 0.0
  %94 = vmatpush.msra.mxu0 0.0
  %95 = vmatpush.msra.mxu0 0.0
  %96 = vmatpush.msra.mxu0 0.0
  %97 = vmatpush.msra.mxu0 0.0
  %98 = vmatpush.msra.mxu0 %v18
  %99 = vmatmul.f32.gmra.mxu0 %v21
  %v100 = vpop.f32.mrf.mxu0
  %v101 = vadd.f32 0.0, %v100
  %102 = vdwg.mxu0
  %v103 = vld [vmem:[%s2] sm:$0xff]
  %105 = vset.pattern.permute.xlu0 0
  %106 = vperm.xlu0 %105, %v103
  %v107 = vpop.permute.xlu0 %106
  %v109 = vmul.f32 %v41, %v107
  %v110 = vmul.f32 %v61, %v107
  %v111 = vmul.f32 %v81, %v107
  %v112 = vmul.f32 %v101, %v107
  %113 = vst [vmem:[%s3] sm:$0xff] %v109
  %114 = vst [vmem:[%s3 + $0x8] sm:$0xff] %v110
  %115 = vst [vmem:[%s3 + $0x10] sm:$0xff] %v111
  %116 = vst [vmem:[%s3 + $0x18] sm:$0xff] %v112
  // Predicated region
  $region14: #{shufflenet_cs_block_forward.6} parent=0 // pred_check
    _
  $region15: #{shufflenet_cs_block_forward.6} parent=0 // pred_check_branch
    %118 = sbr.rel (0) target = $region17
  $region16: #{shufflenet_cs_block_forward.6} parent=0 // pred_region
    _
  $region17: #{shufflenet_cs_block_forward.6} parent=0 // pred_fallthru
    _
  // Predicated region
  $region18: #{shufflenet_cs_block_forward.6} parent=0 // pred_check
    _
  $region19: #{shufflenet_cs_block_forward.6} parent=0 // pred_check_branch
    %120 = sbr.rel (0) target = $region21
  $region20: #{shufflenet_cs_block_forward.6} parent=0 // pred_region
    _
  $region21: #{shufflenet_cs_block_forward.6} parent=0 // pred_fallthru
    _

// kernel: shufflenet_cs_block_forward.7
$region0: #{shufflenet_cs_block_forward.7}
  #allocation0 [shape = 'u32[]', space=smem, size = 0x4, offset = 0x4, fixed_abs, tag = 'smem constant byte address 0x4 - core index']
  #allocation1 [shape = 'u32[72,128]{1,0:T(1,128)}', space=vmem, size = 0x9000, scoped, tag = 'internal scratch']
  %s0 = inlined_call_operand.vmem [shape: f32[4,512], index: 0, kind: input, shape index: {}]
  %s1 = inlined_call_operand.vmem [shape: f32[4,1], index: 1, kind: input, shape index: {}]
  %s2 = inlined_call_operand.vmem [shape: f32[4,1], index: 2, kind: input, shape index: {}]
  %s3 = inlined_call_operand.vmem [shape: f32[4,512], index: 3, kind: output, shape index: {}]
  %s4 = sld [smem:[#allocation0]]
  $region22: #{shufflenet_cs_block_forward.7} parent=0
    _
  %s6 = ssub.s32 1, %s4
  %s7 = scalar_select 0, %s6, %s4
  // Predicated region
  $region2: #{shufflenet_cs_block_forward.7} parent=0 // pred_check
    _
  $region3: #{shufflenet_cs_block_forward.7} parent=0 // pred_check_branch
    %9 = sbr.rel (0) target = $region5
  $region4: #{shufflenet_cs_block_forward.7} parent=0 // pred_region
    _
  $region5: #{shufflenet_cs_block_forward.7} parent=0 // pred_fallthru
    _
  // Predicated region
  $region6: #{shufflenet_cs_block_forward.7} parent=0 // pred_check
    _
  $region7: #{shufflenet_cs_block_forward.7} parent=0 // pred_check_branch
    %11 = sbr.rel (0) target = $region9
  $region8: #{shufflenet_cs_block_forward.7} parent=0 // pred_region
    _
  $region9: #{shufflenet_cs_block_forward.7} parent=0 // pred_fallthru
    _
  // Predicated region
  $region10: #{shufflenet_cs_block_forward.7} parent=0 // pred_check
    _
  $region11: #{shufflenet_cs_block_forward.7} parent=0 // pred_check_branch
    %13 = sbr.rel (0) target = $region13
  $region12: #{shufflenet_cs_block_forward.7} parent=0 // pred_region
    _
  $region13: #{shufflenet_cs_block_forward.7} parent=0 // pred_fallthru
    _
  %v14 = vld [vmem:[%s0] sm:$0xff]
  %v15 = vld [vmem:[%s0 + $0x8] sm:$0xff]
  %v16 = vld [vmem:[%s1] sm:$0xf]
  %18 = vset.pattern.permute.xlu0 0
  %19 = vperm.xlu0 %18, %v16
  %v20 = vpop.permute.xlu0 %19
  %v22 = vunpack.c.l.s4 839922192
  %v23 = vunpack.c.0.s8 %v22
  %v24 = vperm.slane %v20, %v23
  %v26 = vmul.f32 %v14, %v24
  %v27 = vmul.f32 %v15, %v24
  %v28 = vld [vmem:[%s2] sm:$0xf]
  %30 = vset.pattern.permute.xlu0 0
  %31 = vperm.xlu0 %30, %v28
  %v32 = vpop.permute.xlu0 %31
  %v34 = vunpack.c.l.s4 839922192
  %v35 = vunpack.c.0.s8 %v34
  %v36 = vperm.slane %v32, %v35
  %v38 = vadd.f32 %v26, %v36
  %v39 = vadd.f32 %v27, %v36
  %v40 = vmax.f32 %v38, 0.0
  %v41 = vmax.f32 %v39, 0.0
  %42 = vst [vmem:[%s3] sm:$0xff] %v40
  %43 = vst [vmem:[%s3 + $0x8] sm:$0xff] %v41
  // Predicated region
  $region14: #{shufflenet_cs_block_forward.7} parent=0 // pred_check
    _
  $region15: #{shufflenet_cs_block_forward.7} parent=0 // pred_check_branch
    %45 = sbr.rel (0) target = $region17
  $region16: #{shufflenet_cs_block_forward.7} parent=0 // pred_region
    _
  $region17: #{shufflenet_cs_block_forward.7} parent=0 // pred_fallthru
    _
  // Predicated region
  $region18: #{shufflenet_cs_block_forward.7} parent=0 // pred_check
    _
  $region19: #{shufflenet_cs_block_forward.7} parent=0 // pred_check_branch
    %47 = sbr.rel (0) target = $region21
  $region20: #{shufflenet_cs_block_forward.7} parent=0 // pred_region
    _
  $region21: #{shufflenet_cs_block_forward.7} parent=0 // pred_fallthru
    _

// kernel: mul.9
$region0: #{mul.9}
  #allocation0 [shape = 's32[1]{0}', space=sflag, size = 0x4, scoped, tag = 'scoped memory for mul.9']
  %s0 = inlined_call_operand.vmem [shape: f32[6,1], index: 0, kind: input, shape index: {}]
  %s1 = inlined_call_operand.vmem [shape: f32[6,1], index: 1, kind: input, shape index: {}]
  %s2 = inlined_call_operand.vmem [shape: f32[6,1], index: 2, kind: output, shape index: {}]
  %v3 = vld [vmem:[%s0] sm:$0x3f]
  %v4 = vld [vmem:[%s1] sm:$0x3f]
  %5 = xla_tuple %v3, %v4
  %6 = xla_tuple %5
  %v7 = vmul.f32 %v3, %v4
  %8 = xla_tuple %v7
  %9 = vst [vmem:[%s2] sm:$0xff] %v7

// kernel: shufflenet_cs_block_forward.9
$region0: #{shufflenet_cs_block_forward.9}
  #allocation0 [shape = 'u32[]', space=smem, size = 0x4, offset = 0x4, fixed_abs, tag = 'smem constant byte address 0x4 - core index']
  #allocation1 [shape = 'u32[72,128]{1,0:T(1,128)}', space=vmem, size = 0x9000, scoped, tag = 'internal scratch']
  %s0 = inlined_call_operand.vmem [shape: f32[8,256], index: 0, kind: input, shape index: {}]
  %s1 = inlined_call_operand.vmem [shape: f32[8,1], index: 1, kind: input, shape index: {}]
  %s2 = inlined_call_operand.vmem [shape: f32[8,1], index: 2, kind: input, shape index: {}]
  %s3 = inlined_call_operand.vmem [shape: f32[8,256], index: 3, kind: output, shape index: {}]
  %s4 = sld [smem:[#allocation0]]
  $region22: #{shufflenet_cs_block_forward.9} parent=0
    _
  %s6 = ssub.s32 1, %s4
  %s7 = scalar_select 0, %s6, %s4
  // Predicated region
  $region2: #{shufflenet_cs_block_forward.9} parent=0 // pred_check
    _
  $region3: #{shufflenet_cs_block_forward.9} parent=0 // pred_check_branch
    %9 = sbr.rel (0) target = $region5
  $region4: #{shufflenet_cs_block_forward.9} parent=0 // pred_region
    _
  $region5: #{shufflenet_cs_block_forward.9} parent=0 // pred_fallthru
    _
  // Predicated region
  $region6: #{shufflenet_cs_block_forward.9} parent=0 // pred_check
    _
  $region7: #{shufflenet_cs_block_forward.9} parent=0 // pred_check_branch
    %11 = sbr.rel (0) target = $region9
  $region8: #{shufflenet_cs_block_forward.9} parent=0 // pred_region
    _
  $region9: #{shufflenet_cs_block_forward.9} parent=0 // pred_fallthru
    _
  // Predicated region
  $region10: #{shufflenet_cs_block_forward.9} parent=0 // pred_check
    _
  $region11: #{shufflenet_cs_block_forward.9} parent=0 // pred_check_branch
    %13 = sbr.rel (0) target = $region13
  $region12: #{shufflenet_cs_block_forward.9} parent=0 // pred_region
    _
  $region13: #{shufflenet_cs_block_forward.9} parent=0 // pred_fallthru
    _
  %v14 = vld [vmem:[%s0] sm:$0xff]
  %v15 = vld [vmem:[%s0 + $0x8] sm:$0xff]
  %v16 = vld [vmem:[%s1] sm:$0xff]
  %18 = vset.pattern.permute.xlu0 0
  %19 = vperm.xlu0 %18, %v16
  %v20 = vpop.permute.xlu0 %19
  %v22 = vmul.f32 %v14, %v20
  %v23 = vmul.f32 %v15, %v20
  %v24 = vld [vmem:[%s2] sm:$0xff]
  %26 = vset.pattern.permute.xlu0 0
  %27 = vperm.xlu0 %26, %v24
  %v28 = vpop.permute.xlu0 %27
  %v30 = vadd.f32 %v22, %v28
  %v31 = vadd.f32 %v23, %v28
  %32 = vst [vmem:[%s3] sm:$0xff] %v30
  %33 = vst [vmem:[%s3 + $0x8] sm:$0xff] %v31
  // Predicated region
  $region14: #{shufflenet_cs_block_forward.9} parent=0 // pred_check
    _
  $region15: #{shufflenet_cs_block_forward.9} parent=0 // pred_check_branch
    %35 = sbr.rel (0) target = $region17
  $region16: #{shufflenet_cs_block_forward.9} parent=0 // pred_region
    _
  $region17: #{shufflenet_cs_block_forward.9} parent=0 // pred_fallthru
    _
  // Predicated region
  $region18: #{shufflenet_cs_block_forward.9} parent=0 // pred_check
    _
  $region19: #{shufflenet_cs_block_forward.9} parent=0 // pred_check_branch
    %37 = sbr.rel (0) target = $region21
  $region20: #{shufflenet_cs_block_forward.9} parent=0 // pred_region
    _
  $region21: #{shufflenet_cs_block_forward.9} parent=0 // pred_fallthru
    _

// kernel: shufflenet_cs_block_forward.8
$region0: #{shufflenet_cs_block_forward.8}
  #allocation0 [shape = 'u32[]', space=smem, size = 0x4, offset = 0x4, fixed_abs, tag = 'smem constant byte address 0x4 - core index']
  #allocation1 [shape = 'u32[72,128]{1,0:T(1,128)}', space=vmem, size = 0x9000, scoped, tag = 'internal scratch']
  %s0 = inlined_call_operand.vmem [shape: f32[8,18,18], index: 0, kind: input, shape index: {}]
  %s1 = inlined_call_operand.vmem [shape: f32[8,9], index: 1, kind: input, shape index: {}]
  %s2 = inlined_call_operand.vmem [shape: f32[8,16,16], index: 2, kind: output, shape index: {}]
  %s3 = sld [smem:[#allocation0]]
  $region18: #{shufflenet_cs_block_forward.8} parent=0
    _
  %s5 = ssub.s32 1, %s3
  %s6 = scalar_select 0, %s5, %s3
  // Predicated region
  $region2: #{shufflenet_cs_block_forward.8} parent=0 // pred_check
    _
  $region3: #{shufflenet_cs_block_forward.8} parent=0 // pred_check_branch
    %8 = sbr.rel (0) target = $region5
  $region4: #{shufflenet_cs_block_forward.8} parent=0 // pred_region
    _
  $region5: #{shufflenet_cs_block_forward.8} parent=0 // pred_fallthru
    _
  // Predicated region
  $region6: #{shufflenet_cs_block_forward.8} parent=0 // pred_check
    _
  $region7: #{shufflenet_cs_block_forward.8} parent=0 // pred_check_branch
    %10 = sbr.rel (0) target = $region9
  $region8: #{shufflenet_cs_block_forward.8} parent=0 // pred_region
    _
  $region9: #{shufflenet_cs_block_forward.8} parent=0 // pred_fallthru
    _
  %v11 = vld [vmem:[%s0] sm:$0xff]
  %v12 = vld [vmem:[%s0 + $0x8] sm:$0xff]
  %v13 = vld [vmem:[%s0 + $0x10] sm:$0x3]
  %v14 = vld [vmem:[%s0 + $0x18] sm:$0xff]
  %v15 = vld [vmem:[%s0 + $0x20] sm:$0xff]
  %v16 = vld [vmem:[%s0 + $0x28] sm:$0x3]
  %v17 = vld [vmem:[%s0 + $0x30] sm:$0xff]
  %v18 = vld [vmem:[%s0 + $0x38] sm:$0xff]
  %v19 = vld [vmem:[%s0 + $0x40] sm:$0x3]
  %v20 = vld [vmem:[%s0 + $0x48] sm:$0xff]
  %v21 = vld [vmem:[%s0 + $0x50] sm:$0xff]
  %v22 = vld [vmem:[%s0 + $0x58] sm:$0x3]
  %v23 = vld [vmem:[%s0 + $0x60] sm:$0xff]
  %v24 = vld [vmem:[%s0 + $0x68] sm:$0xff]
  %v25 = vld [vmem:[%s0 + $0x70] sm:$0x3]
  %v26 = vld [vmem:[%s0 + $0x78] sm:$0xff]
  %v27 = vld [vmem:[%s0 + $0x80] sm:$0xff]
  %v28 = vld [vmem:[%s0 + $0x88] sm:$0x3]
  %v29 = vld [vmem:[%s0 + $0x90] sm:$0xff]
  %v30 = vld [vmem:[%s0 + $0x98] sm:$0xff]
  %v31 = vld [vmem:[%s0 + $0xa0] sm:$0x3]
  %v32 = vld [vmem:[%s0 + $0xa8] sm:$0xff]
  %v33 = vld [vmem:[%s0 + $0xb0] sm:$0xff]
  %v34 = vld [vmem:[%s0 + $0xb8] sm:$0x3]
  %v35 = vld [vmem:[%s1] sm:$0xff]
  %v37 = vrot.slane %v35, 1
  %v38 = vrot.slane %v35, 2
  %v39 = vrot.slane %v35, 3
  %v40 = vrot.slane %v35, 4
  %v41 = vrot.slane %v35, 5
  %v42 = vrot.slane %v35, 6
  %v43 = vrot.slane %v35, 7
  %v44 = vperm.slane %v35, 0
  %v45 = vperm.slane %v37, 0
  %v46 = vperm.slane %v38, 0
  %v47 = vperm.slane %v39, 0
  %v48 = vperm.slane %v40, 0
  %v49 = vperm.slane %v41, 0
  %v50 = vperm.slane %v42, 0
  %v51 = vperm.slane %v43, 0
  %52 = vset.pattern.permute.xlu0 0
  %53 = vperm.xlu0 %52, %v44
  %v54 = vpop.permute.xlu0 %53
  %56 = vset.pattern.permute.xlu0 0
  %57 = vperm.xlu0 %56, %v45
  %v58 = vpop.permute.xlu0 %57
  %60 = vset.pattern.permute.xlu0 0
  %61 = vperm.xlu0 %60, %v46
  %v62 = vpop.permute.xlu0 %61
  %64 = vset.pattern.permute.xlu0 0
  %65 = vperm.xlu0 %64, %v47
  %v66 = vpop.permute.xlu0 %65
  %68 = vset.pattern.permute.xlu0 0
  %69 = vperm.xlu0 %68, %v48
  %v70 = vpop.permute.xlu0 %69
  %72 = vset.pattern.permute.xlu0 0
  %73 = vperm.xlu0 %72, %v49
  %v74 = vpop.permute.xlu0 %73
  %76 = vset.pattern.permute.xlu0 0
  %77 = vperm.xlu0 %76, %v50
  %v78 = vpop.permute.xlu0 %77
  %80 = vset.pattern.permute.xlu0 0
  %81 = vperm.xlu0 %80, %v51
  %v82 = vpop.permute.xlu0 %81
  %v84 = vmul.f32 %v11, %v54
  %v85 = vmul.f32 %v12, %v54
  %v86 = vmul.f32 %v14, %v58
  %v87 = vmul.f32 %v15, %v58
  %v88 = vmul.f32 %v17, %v62
  %v89 = vmul.f32 %v18, %v62
  %v90 = vmul.f32 %v20, %v66
  %v91 = vmul.f32 %v21, %v66
  %v92 = vmul.f32 %v23, %v70
  %v93 = vmul.f32 %v24, %v70
  %v94 = vmul.f32 %v26, %v74
  %v95 = vmul.f32 %v27, %v74
  %v96 = vmul.f32 %v29, %v78
  %v97 = vmul.f32 %v30, %v78
  %v98 = vmul.f32 %v32, %v82
  %v99 = vmul.f32 %v33, %v82
  %v100 = vadd.f32 %v84, 0.0
  %v101 = vadd.f32 %v85, 0.0
  %v102 = vadd.f32 %v86, 0.0
  %v103 = vadd.f32 %v87, 0.0
  %v104 = vadd.f32 %v88, 0.0
  %v105 = vadd.f32 %v89, 0.0
  %v106 = vadd.f32 %v90, 0.0
  %v107 = vadd.f32 %v91, 0.0
  %v108 = vadd.f32 %v92, 0.0
  %v109 = vadd.f32 %v93, 0.0
  %v110 = vadd.f32 %v94, 0.0
  %v111 = vadd.f32 %v95, 0.0
  %v112 = vadd.f32 %v96, 0.0
  %v113 = vadd.f32 %v97, 0.0
  %v114 = vadd.f32 %v98, 0.0
  %v115 = vadd.f32 %v99, 0.0
  %116 = vset.pattern.permute.xlu0 1
  %117 = vperm.xlu0 %116, %v44
  %v118 = vpop.permute.xlu0 %117
  %120 = vset.pattern.permute.xlu0 1
  %121 = vperm.xlu0 %120, %v45
  %v122 = vpop.permute.xlu0 %121
  %124 = vset.pattern.permute.xlu0 1
  %125 = vperm.xlu0 %124, %v46
  %v126 = vpop.permute.xlu0 %125
  %128 = vset.pattern.permute.xlu0 1
  %129 = vperm.xlu0 %128, %v47
  %v130 = vpop.permute.xlu0 %129
  %132 = vset.pattern.permute.xlu0 1
  %133 = vperm.xlu0 %132, %v48
  %v134 = vpop.permute.xlu0 %133
  %136 = vset.pattern.permute.xlu0 1
  %137 = vperm.xlu0 %136, %v49
  %v138 = vpop.permute.xlu0 %137
  %140 = vset.pattern.permute.xlu0 1
  %141 = vperm.xlu0 %140, %v50
  %v142 = vpop.permute.xlu0 %141
  %144 = vset.pattern.permute.xlu0 1
  %145 = vperm.xlu0 %144, %v51
  %v146 = vpop.permute.xlu0 %145
  %v148 = vmul.f32 %v11, %v118
  %v149 = vmul.f32 %v12, %v118
  %v150 = vmul.f32 %v14, %v122
  %v151 = vmul.f32 %v15, %v122
  %v152 = vmul.f32 %v17, %v126
  %v153 = vmul.f32 %v18, %v126
  %v154 = vmul.f32 %v20, %v130
  %v155 = vmul.f32 %v21, %v130
  %v156 = vmul.f32 %v23, %v134
  %v157 = vmul.f32 %v24, %v134
  %v158 = vmul.f32 %v26, %v138
  %v159 = vmul.f32 %v27, %v138
  %v160 = vmul.f32 %v29, %v142
  %v161 = vmul.f32 %v30, %v142
  %v162 = vmul.f32 %v32, %v146
  %v163 = vmul.f32 %v33, %v146
  %180 = vrot.lane.b32.xlu0 %v148, 127
  %v181 = vpop.permute.xlu0 %180
  %182 = vrot.lane.b32.xlu0 %v149, 127
  %v183 = vpop.permute.xlu0 %182
  %184 = vrot.lane.b32.xlu0 %v150, 127
  %v185 = vpop.permute.xlu0 %184
  %186 = vrot.lane.b32.xlu0 %v151, 127
  %v187 = vpop.permute.xlu0 %186
  %188 = vrot.lane.b32.xlu0 %v152, 127
  %v189 = vpop.permute.xlu0 %188
  %190 = vrot.lane.b32.xlu0 %v153, 127
  %v191 = vpop.permute.xlu0 %190
  %192 = vrot.lane.b32.xlu0 %v154, 127
  %v193 = vpop.permute.xlu0 %192
  %194 = vrot.lane.b32.xlu0 %v155, 127
  %v195 = vpop.permute.xlu0 %194
  %196 = vrot.lane.b32.xlu0 %v156, 127
  %v197 = vpop.permute.xlu0 %196
  %198 = vrot.lane.b32.xlu0 %v157, 127
  %v199 = vpop.permute.xlu0 %198
  %200 = vrot.lane.b32.xlu0 %v158, 127
  %v201 = vpop.permute.xlu0 %200
  %202 = vrot.lane.b32.xlu0 %v159, 127
  %v203 = vpop.permute.xlu0 %202
  %204 = vrot.lane.b32.xlu0 %v160, 127
  %v205 = vpop.permute.xlu0 %204
  %206 = vrot.lane.b32.xlu0 %v161, 127
  %v207 = vpop.permute.xlu0 %206
  %208 = vrot.lane.b32.xlu0 %v162, 127
  %v209 = vpop.permute.xlu0 %208
  %210 = vrot.lane.b32.xlu0 %v163, 127
  %v211 = vpop.permute.xlu0 %210
  %v228 = vadd.f32 %v100, %v181
  %v229 = vadd.f32 %v101, %v183
  %v230 = vadd.f32 %v102, %v185
  %v231 = vadd.f32 %v103, %v187
  %v232 = vadd.f32 %v104, %v189
  %v233 = vadd.f32 %v105, %v191
  %v234 = vadd.f32 %v106, %v193
  %v235 = vadd.f32 %v107, %v195
  %v236 = vadd.f32 %v108, %v197
  %v237 = vadd.f32 %v109, %v199
  %v238 = vadd.f32 %v110, %v201
  %v239 = vadd.f32 %v111, %v203
  %v240 = vadd.f32 %v112, %v205
  %v241 = vadd.f32 %v113, %v207
  %v242 = vadd.f32 %v114, %v209
  %v243 = vadd.f32 %v115, %v211
  %244 = vset.pattern.permute.xlu0 2
  %245 = vperm.xlu0 %244, %v44
  %v246 = vpop.permute.xlu0 %245
  %248 = vset.pattern.permute.xlu0 2
  %249 = vperm.xlu0 %248, %v45
  %v250 = vpop.permute.xlu0 %249
  %252 = vset.pattern.permute.xlu0 2
  %253 = vperm.xlu0 %252, %v46
  %v254 = vpop.permute.xlu0 %253
  %256 = vset.pattern.permute.xlu0 2
  %257 = vperm.xlu0 %256, %v47
  %v258 = vpop.permute.xlu0 %257
  %260 = vset.pattern.permute.xlu0 2
  %261 = vperm.xlu0 %260, %v48
  %v262 = vpop.permute.xlu0 %261
  %264 = vset.pattern.permute.xlu0 2
  %265 = vperm.xlu0 %264, %v49
  %v266 = vpop.permute.xlu0 %265
  %268 = vset.pattern.permute.xlu0 2
  %269 = vperm.xlu0 %268, %v50
  %v270 = vpop.permute.xlu0 %269
  %272 = vset.pattern.permute.xlu0 2
  %273 = vperm.xlu0 %272, %v51
  %v274 = vpop.permute.xlu0 %273
  %v276 = vmul.f32 %v11, %v246
  %v277 = vmul.f32 %v12, %v246
  %v278 = vmul.f32 %v14, %v250
  %v279 = vmul.f32 %v15, %v250
  %v280 = vmul.f32 %v17, %v254
  %v281 = vmul.f32 %v18, %v254
  %v282 = vmul.f32 %v20, %v258
  %v283 = vmul.f32 %v21, %v258
  %v284 = vmul.f32 %v23, %v262
  %v285 = vmul.f32 %v24, %v262
  %v286 = vmul.f32 %v26, %v266
  %v287 = vmul.f32 %v27, %v266
  %v288 = vmul.f32 %v29, %v270
  %v289 = vmul.f32 %v30, %v270
  %v290 = vmul.f32 %v32, %v274
  %v291 = vmul.f32 %v33, %v274
  %308 = vrot.lane.b32.xlu0 %v276, 126
  %v309 = vpop.permute.xlu0 %308
  %310 = vrot.lane.b32.xlu0 %v277, 126
  %v311 = vpop.permute.xlu0 %310
  %312 = vrot.lane.b32.xlu0 %v278, 126
  %v313 = vpop.permute.xlu0 %312
  %314 = vrot.lane.b32.xlu0 %v279, 126
  %v315 = vpop.permute.xlu0 %314
  %316 = vrot.lane.b32.xlu0 %v280, 126
  %v317 = vpop.permute.xlu0 %316
  %318 = vrot.lane.b32.xlu0 %v281, 126
  %v319 = vpop.permute.xlu0 %318
  %320 = vrot.lane.b32.xlu0 %v282, 126
  %v321 = vpop.permute.xlu0 %320
  %322 = vrot.lane.b32.xlu0 %v283, 126
  %v323 = vpop.permute.xlu0 %322
  %324 = vrot.lane.b32.xlu0 %v284, 126
  %v325 = vpop.permute.xlu0 %324
  %326 = vrot.lane.b32.xlu0 %v285, 126
  %v327 = vpop.permute.xlu0 %326
  %328 = vrot.lane.b32.xlu0 %v286, 126
  %v329 = vpop.permute.xlu0 %328
  %330 = vrot.lane.b32.xlu0 %v287, 126
  %v331 = vpop.permute.xlu0 %330
  %332 = vrot.lane.b32.xlu0 %v288, 126
  %v333 = vpop.permute.xlu0 %332
  %334 = vrot.lane.b32.xlu0 %v289, 126
  %v335 = vpop.permute.xlu0 %334
  %336 = vrot.lane.b32.xlu0 %v290, 126
  %v337 = vpop.permute.xlu0 %336
  %338 = vrot.lane.b32.xlu0 %v291, 126
  %v339 = vpop.permute.xlu0 %338
  %v356 = vadd.f32 %v228, %v309
  %v357 = vadd.f32 %v229, %v311
  %v358 = vadd.f32 %v230, %v313
  %v359 = vadd.f32 %v231, %v315
  %v360 = vadd.f32 %v232, %v317
  %v361 = vadd.f32 %v233, %v319
  %v362 = vadd.f32 %v234, %v321
  %v363 = vadd.f32 %v235, %v323
  %v364 = vadd.f32 %v236, %v325
  %v365 = vadd.f32 %v237, %v327
  %v366 = vadd.f32 %v238, %v329
  %v367 = vadd.f32 %v239, %v331
  %v368 = vadd.f32 %v240, %v333
  %v369 = vadd.f32 %v241, %v335
  %v370 = vadd.f32 %v242, %v337
  %v371 = vadd.f32 %v243, %v339
  %372 = vset.pattern.permute.xlu0 3
  %373 = vperm.xlu0 %372, %v44
  %v374 = vpop.permute.xlu0 %373
  %376 = vset.pattern.permute.xlu0 3
  %377 = vperm.xlu0 %376, %v45
  %v378 = vpop.permute.xlu0 %377
  %380 = vset.pattern.permute.xlu0 3
  %381 = vperm.xlu0 %380, %v46
  %v382 = vpop.permute.xlu0 %381
  %384 = vset.pattern.permute.xlu0 3
  %385 = vperm.xlu0 %384, %v47
  %v386 = vpop.permute.xlu0 %385
  %388 = vset.pattern.permute.xlu0 3
  %389 = vperm.xlu0 %388, %v48
  %v390 = vpop.permute.xlu0 %389
  %392 = vset.pattern.permute.xlu0 3
  %393 = vperm.xlu0 %392, %v49
  %v394 = vpop.permute.xlu0 %393
  %396 = vset.pattern.permute.xlu0 3
  %397 = vperm.xlu0 %396, %v50
  %v398 = vpop.permute.xlu0 %397
  %400 = vset.pattern.permute.xlu0 3
  %401 = vperm.xlu0 %400, %v51
  %v402 = vpop.permute.xlu0 %401
  %v404 = vmul.f32 %v11, %v374
  %v405 = vmul.f32 %v12, %v374
  %v406 = vmul.f32 %v13, %v374
  %v407 = vmul.f32 %v14, %v378
  %v408 = vmul.f32 %v15, %v378
  %v409 = vmul.f32 %v16, %v378
  %v410 = vmul.f32 %v17, %v382
  %v411 = vmul.f32 %v18, %v382
  %v412 = vmul.f32 %v19, %v382
  %v413 = vmul.f32 %v20, %v386
  %v414 = vmul.f32 %v21, %v386
  %v415 = vmul.f32 %v22, %v386
  %v416 = vmul.f32 %v23, %v390
  %v417 = vmul.f32 %v24, %v390
  %v418 = vmul.f32 %v25, %v390
  %v419 = vmul.f32 %v26, %v394
  %v420 = vmul.f32 %v27, %v394
  %v421 = vmul.f32 %v28, %v394
  %v422 = vmul.f32 %v29, %v398
  %v423 = vmul.f32 %v30, %v398
  %v424 = vmul.f32 %v31, %v398
  %v425 = vmul.f32 %v32, %v402
  %v426 = vmul.f32 %v33, %v402
  %v427 = vmul.f32 %v34, %v402
  %vm452 = vcmask 1046528
  %v453 = vrot.slane %v404, 1
  %v454 = vrot.slane %v405, 1
  %v455 = vsel %vm452, %v453, %v454
  %v456 = vrot.slane %v406, 1
  %v457 = vsel %vm452, %v454, %v456
  %v458 = vrot.slane %v407, 1
  %v459 = vrot.slane %v408, 1
  %v460 = vsel %vm452, %v458, %v459
  %v461 = vrot.slane %v409, 1
  %v462 = vsel %vm452, %v459, %v461
  %v463 = vrot.slane %v410, 1
  %v464 = vrot.slane %v411, 1
  %v465 = vsel %vm452, %v463, %v464
  %v466 = vrot.slane %v412, 1
  %v467 = vsel %vm452, %v464, %v466
  %v468 = vrot.slane %v413, 1
  %v469 = vrot.slane %v414, 1
  %v470 = vsel %vm452, %v468, %v469
  %v471 = vrot.slane %v415, 1
  %v472 = vsel %vm452, %v469, %v471
  %v473 = vrot.slane %v416, 1
  %v474 = vrot.slane %v417, 1
  %v475 = vsel %vm452, %v473, %v474
  %v476 = vrot.slane %v418, 1
  %v477 = vsel %vm452, %v474, %v476
  %v478 = vrot.slane %v419, 1
  %v479 = vrot.slane %v420, 1
  %v480 = vsel %vm452, %v478, %v479
  %v481 = vrot.slane %v421, 1
  %v482 = vsel %vm452, %v479, %v481
  %v483 = vrot.slane %v422, 1
  %v484 = vrot.slane %v423, 1
  %v485 = vsel %vm452, %v483, %v484
  %v486 = vrot.slane %v424, 1
  %v487 = vsel %vm452, %v484, %v486
  %v488 = vrot.slane %v425, 1
  %v489 = vrot.slane %v426, 1
  %v490 = vsel %vm452, %v488, %v489
  %v491 = vrot.slane %v427, 1
  %v492 = vsel %vm452, %v489, %v491
  %v509 = vadd.f32 %v356, %v455
  %v510 = vadd.f32 %v357, %v457
  %v511 = vadd.f32 %v358, %v460
  %v512 = vadd.f32 %v359, %v462
  %v513 = vadd.f32 %v360, %v465
  %v514 = vadd.f32 %v361, %v467
  %v515 = vadd.f32 %v362, %v470
  %v516 = vadd.f32 %v363, %v472
  %v517 = vadd.f32 %v364, %v475
  %v518 = vadd.f32 %v365, %v477
  %v519 = vadd.f32 %v366, %v480
  %v520 = vadd.f32 %v367, %v482
  %v521 = vadd.f32 %v368, %v485
  %v522 = vadd.f32 %v369, %v487
  %v523 = vadd.f32 %v370, %v490
  %v524 = vadd.f32 %v371, %v492
  %525 = vset.pattern.permute.xlu0 4
  %526 = vperm.xlu0 %525, %v44
  %v527 = vpop.permute.xlu0 %526
  %529 = vset.pattern.permute.xlu0 4
  %530 = vperm.xlu0 %529, %v45
  %v531 = vpop.permute.xlu0 %530
  %533 = vset.pattern.permute.xlu0 4
  %534 = vperm.xlu0 %533, %v46
  %v535 = vpop.permute.xlu0 %534
  %537 = vset.pattern.permute.xlu0 4
  %538 = vperm.xlu0 %537, %v47
  %v539 = vpop.permute.xlu0 %538
  %541 = vset.pattern.permute.xlu0 4
  %542 = vperm.xlu0 %541, %v48
  %v543 = vpop.permute.xlu0 %542
  %545 = vset.pattern.permute.xlu0 4
  %546 = vperm.xlu0 %545, %v49
  %v547 = vpop.permute.xlu0 %546
  %549 = vset.pattern.permute.xlu0 4
  %550 = vperm.xlu0 %549, %v50
  %v551 = vpop.permute.xlu0 %550
  %553 = vset.pattern.permute.xlu0 4
  %554 = vperm.xlu0 %553, %v51
  %v555 = vpop.permute.xlu0 %554
  %v557 = vmul.f32 %v11, %v527
  %v558 = vmul.f32 %v12, %v527
  %v559 = vmul.f32 %v13, %v527
  %v560 = vmul.f32 %v14, %v531
  %v561 = vmul.f32 %v15, %v531
  %v562 = vmul.f32 %v16, %v531
  %v563 = vmul.f32 %v17, %v535
  %v564 = vmul.f32 %v18, %v535
  %v565 = vmul.f32 %v19, %v535
  %v566 = vmul.f32 %v20, %v539
  %v567 = vmul.f32 %v21, %v539
  %v568 = vmul.f32 %v22, %v539
  %v569 = vmul.f32 %v23, %v543
  %v570 = vmul.f32 %v24, %v543
  %v571 = vmul.f32 %v25, %v543
  %v572 = vmul.f32 %v26, %v547
  %v573 = vmul.f32 %v27, %v547
  %v574 = vmul.f32 %v28, %v547
  %v575 = vmul.f32 %v29, %v551
  %v576 = vmul.f32 %v30, %v551
  %v577 = vmul.f32 %v31, %v551
  %v578 = vmul.f32 %v32, %v555
  %v579 = vmul.f32 %v33, %v555
  %v580 = vmul.f32 %v34, %v555
  %v605 = vrot.slane %v557, 1
  %v606 = vrot.slane %v558, 1
  %v607 = vsel %vm452, %v605, %v606
  %v608 = vrot.slane %v559, 1
  %v609 = vsel %vm452, %v606, %v608
  %v610 = vrot.slane %v560, 1
  %v611 = vrot.slane %v561, 1
  %v612 = vsel %vm452, %v610, %v611
  %v613 = vrot.slane %v562, 1
  %v614 = vsel %vm452, %v611, %v613
  %v615 = vrot.slane %v563, 1
  %v616 = vrot.slane %v564, 1
  %v617 = vsel %vm452, %v615, %v616
  %v618 = vrot.slane %v565, 1
  %v619 = vsel %vm452, %v616, %v618
  %v620 = vrot.slane %v566, 1
  %v621 = vrot.slane %v567, 1
  %v622 = vsel %vm452, %v620, %v621
  %v623 = vrot.slane %v568, 1
  %v624 = vsel %vm452, %v621, %v623
  %v625 = vrot.slane %v569, 1
  %v626 = vrot.slane %v570, 1
  %v627 = vsel %vm452, %v625, %v626
  %v628 = vrot.slane %v571, 1
  %v629 = vsel %vm452, %v626, %v628
  %v630 = vrot.slane %v572, 1
  %v631 = vrot.slane %v573, 1
  %v632 = vsel %vm452, %v630, %v631
  %v633 = vrot.slane %v574, 1
  %v634 = vsel %vm452, %v631, %v633
  %v635 = vrot.slane %v575, 1
  %v636 = vrot.slane %v576, 1
  %v637 = vsel %vm452, %v635, %v636
  %v638 = vrot.slane %v577, 1
  %v639 = vsel %vm452, %v636, %v638
  %v640 = vrot.slane %v578, 1
  %v641 = vrot.slane %v579, 1
  %v642 = vsel %vm452, %v640, %v641
  %v643 = vrot.slane %v580, 1
  %v644 = vsel %vm452, %v641, %v643
  %645 = vrot.lane.b32.xlu0 %v607, 127
  %v646 = vpop.permute.xlu0 %645
  %647 = vrot.lane.b32.xlu0 %v609, 127
  %v648 = vpop.permute.xlu0 %647
  %649 = vrot.lane.b32.xlu0 %v612, 127
  %v650 = vpop.permute.xlu0 %649
  %651 = vrot.lane.b32.xlu0 %v614, 127
  %v652 = vpop.permute.xlu0 %651
  %653 = vrot.lane.b32.xlu0 %v617, 127
  %v654 = vpop.permute.xlu0 %653
  %655 = vrot.lane.b32.xlu0 %v619, 127
  %v656 = vpop.permute.xlu0 %655
  %657 = vrot.lane.b32.xlu0 %v622, 127
  %v658 = vpop.permute.xlu0 %657
  %659 = vrot.lane.b32.xlu0 %v624, 127
  %v660 = vpop.permute.xlu0 %659
  %661 = vrot.lane.b32.xlu0 %v627, 127
  %v662 = vpop.permute.xlu0 %661
  %663 = vrot.lane.b32.xlu0 %v629, 127
  %v664 = vpop.permute.xlu0 %663
  %665 = vrot.lane.b32.xlu0 %v632, 127
  %v666 = vpop.permute.xlu0 %665
  %667 = vrot.lane.b32.xlu0 %v634, 127
  %v668 = vpop.permute.xlu0 %667
  %669 = vrot.lane.b32.xlu0 %v637, 127
  %v670 = vpop.permute.xlu0 %669
  %671 = vrot.lane.b32.xlu0 %v639, 127
  %v672 = vpop.permute.xlu0 %671
  %673 = vrot.lane.b32.xlu0 %v642, 127
  %v674 = vpop.permute.xlu0 %673
  %675 = vrot.lane.b32.xlu0 %v644, 127
  %v676 = vpop.permute.xlu0 %675
  %v693 = vadd.f32 %v509, %v646
  %v694 = vadd.f32 %v510, %v648
  %v695 = vadd.f32 %v511, %v650
  %v696 = vadd.f32 %v512, %v652
  %v697 = vadd.f32 %v513, %v654
  %v698 = vadd.f32 %v514, %v656
  %v699 = vadd.f32 %v515, %v658
  %v700 = vadd.f32 %v516, %v660
  %v701 = vadd.f32 %v517, %v662
  %v702 = vadd.f32 %v518, %v664
  %v703 = vadd.f32 %v519, %v666
  %v704 = vadd.f32 %v520, %v668
  %v705 = vadd.f32 %v521, %v670
  %v706 = vadd.f32 %v522, %v672
  %v707 = vadd.f32 %v523, %v674
  %v708 = vadd.f32 %v524, %v676
  %709 = vset.pattern.permute.xlu0 5
  %710 = vperm.xlu0 %709, %v44
  %v711 = vpop.permute.xlu0 %710
  %713 = vset.pattern.permute.xlu0 5
  %714 = vperm.xlu0 %713, %v45
  %v715 = vpop.permute.xlu0 %714
  %717 = vset.pattern.permute.xlu0 5
  %718 = vperm.xlu0 %717, %v46
  %v719 = vpop.permute.xlu0 %718
  %721 = vset.pattern.permute.xlu0 5
  %722 = vperm.xlu0 %721, %v47
  %v723 = vpop.permute.xlu0 %722
  %725 = vset.pattern.permute.xlu0 5
  %726 = vperm.xlu0 %725, %v48
  %v727 = vpop.permute.xlu0 %726
  %729 = vset.pattern.permute.xlu0 5
  %730 = vperm.xlu0 %729, %v49
  %v731 = vpop.permute.xlu0 %730
  %733 = vset.pattern.permute.xlu0 5
  %734 = vperm.xlu0 %733, %v50
  %v735 = vpop.permute.xlu0 %734
  %737 = vset.pattern.permute.xlu0 5
  %738 = vperm.xlu0 %737, %v51
  %v739 = vpop.permute.xlu0 %738
  %v741 = vmul.f32 %v11, %v711
  %v742 = vmul.f32 %v12, %v711
  %v743 = vmul.f32 %v13, %v711
  %v744 = vmul.f32 %v14, %v715
  %v745 = vmul.f32 %v15, %v715
  %v746 = vmul.f32 %v16, %v715
  %v747 = vmul.f32 %v17, %v719
  %v748 = vmul.f32 %v18, %v719
  %v749 = vmul.f32 %v19, %v719
  %v750 = vmul.f32 %v20, %v723
  %v751 = vmul.f32 %v21, %v723
  %v752 = vmul.f32 %v22, %v723
  %v753 = vmul.f32 %v23, %v727
  %v754 = vmul.f32 %v24, %v727
  %v755 = vmul.f32 %v25, %v727
  %v756 = vmul.f32 %v26, %v731
  %v757 = vmul.f32 %v27, %v731
  %v758 = vmul.f32 %v28, %v731
  %v759 = vmul.f32 %v29, %v735
  %v760 = vmul.f32 %v30, %v735
  %v761 = vmul.f32 %v31, %v735
  %v762 = vmul.f32 %v32, %v739
  %v763 = vmul.f32 %v33, %v739
  %v764 = vmul.f32 %v34, %v739
  %v789 = vrot.slane %v741, 1
  %v790 = vrot.slane %v742, 1
  %v791 = vsel %vm452, %v789, %v790
  %v792 = vrot.slane %v743, 1
  %v793 = vsel %vm452, %v790, %v792
  %v794 = vrot.slane %v744, 1
  %v795 = vrot.slane %v745, 1
  %v796 = vsel %vm452, %v794, %v795
  %v797 = vrot.slane %v746, 1
  %v798 = vsel %vm452, %v795, %v797
  %v799 = vrot.slane %v747, 1
  %v800 = vrot.slane %v748, 1
  %v801 = vsel %vm452, %v799, %v800
  %v802 = vrot.slane %v749, 1
  %v803 = vsel %vm452, %v800, %v802
  %v804 = vrot.slane %v750, 1
  %v805 = vrot.slane %v751, 1
  %v806 = vsel %vm452, %v804, %v805
  %v807 = vrot.slane %v752, 1
  %v808 = vsel %vm452, %v805, %v807
  %v809 = vrot.slane %v753, 1
  %v810 = vrot.slane %v754, 1
  %v811 = vsel %vm452, %v809, %v810
  %v812 = vrot.slane %v755, 1
  %v813 = vsel %vm452, %v810, %v812
  %v814 = vrot.slane %v756, 1
  %v815 = vrot.slane %v757, 1
  %v816 = vsel %vm452, %v814, %v815
  %v817 = vrot.slane %v758, 1
  %v818 = vsel %vm452, %v815, %v817
  %v819 = vrot.slane %v759, 1
  %v820 = vrot.slane %v760, 1
  %v821 = vsel %vm452, %v819, %v820
  %v822 = vrot.slane %v761, 1
  %v823 = vsel %vm452, %v820, %v822
  %v824 = vrot.slane %v762, 1
  %v825 = vrot.slane %v763, 1
  %v826 = vsel %vm452, %v824, %v825
  %v827 = vrot.slane %v764, 1
  %v828 = vsel %vm452, %v825, %v827
  %829 = vrot.lane.b32.xlu0 %v791, 126
  %v830 = vpop.permute.xlu0 %829
  %831 = vrot.lane.b32.xlu0 %v793, 126
  %v832 = vpop.permute.xlu0 %831
  %833 = vrot.lane.b32.xlu0 %v796, 126
  %v834 = vpop.permute.xlu0 %833
  %835 = vrot.lane.b32.xlu0 %v798, 126
  %v836 = vpop.permute.xlu0 %835
  %837 = vrot.lane.b32.xlu0 %v801, 126
  %v838 = vpop.permute.xlu0 %837
  %839 = vrot.lane.b32.xlu0 %v803, 126
  %v840 = vpop.permute.xlu0 %839
  %841 = vrot.lane.b32.xlu0 %v806, 126
  %v842 = vpop.permute.xlu0 %841
  %843 = vrot.lane.b32.xlu0 %v808, 126
  %v844 = vpop.permute.xlu0 %843
  %845 = vrot.lane.b32.xlu0 %v811, 126
  %v846 = vpop.permute.xlu0 %845
  %847 = vrot.lane.b32.xlu0 %v813, 126
  %v848 = vpop.permute.xlu0 %847
  %849 = vrot.lane.b32.xlu0 %v816, 126
  %v850 = vpop.permute.xlu0 %849
  %851 = vrot.lane.b32.xlu0 %v818, 126
  %v852 = vpop.permute.xlu0 %851
  %853 = vrot.lane.b32.xlu0 %v821, 126
  %v854 = vpop.permute.xlu0 %853
  %855 = vrot.lane.b32.xlu0 %v823, 126
  %v856 = vpop.permute.xlu0 %855
  %857 = vrot.lane.b32.xlu0 %v826, 126
  %v858 = vpop.permute.xlu0 %857
  %859 = vrot.lane.b32.xlu0 %v828, 126
  %v860 = vpop.permute.xlu0 %859
  %v877 = vadd.f32 %v693, %v830
  %v878 = vadd.f32 %v694, %v832
  %v879 = vadd.f32 %v695, %v834
  %v880 = vadd.f32 %v696, %v836
  %v881 = vadd.f32 %v697, %v838
  %v882 = vadd.f32 %v698, %v840
  %v883 = vadd.f32 %v699, %v842
  %v884 = vadd.f32 %v700, %v844
  %v885 = vadd.f32 %v701, %v846
  %v886 = vadd.f32 %v702, %v848
  %v887 = vadd.f32 %v703, %v850
  %v888 = vadd.f32 %v704, %v852
  %v889 = vadd.f32 %v705, %v854
  %v890 = vadd.f32 %v706, %v856
  %v891 = vadd.f32 %v707, %v858
  %v892 = vadd.f32 %v708, %v860
  %893 = vset.pattern.permute.xlu0 6
  %894 = vperm.xlu0 %893, %v44
  %v895 = vpop.permute.xlu0 %894
  %897 = vset.pattern.permute.xlu0 6
  %898 = vperm.xlu0 %897, %v45
  %v899 = vpop.permute.xlu0 %898
  %901 = vset.pattern.permute.xlu0 6
  %902 = vperm.xlu0 %901, %v46
  %v903 = vpop.permute.xlu0 %902
  %905 = vset.pattern.permute.xlu0 6
  %906 = vperm.xlu0 %905, %v47
  %v907 = vpop.permute.xlu0 %906
  %909 = vset.pattern.permute.xlu0 6
  %910 = vperm.xlu0 %909, %v48
  %v911 = vpop.permute.xlu0 %910
  %913 = vset.pattern.permute.xlu0 6
  %914 = vperm.xlu0 %913, %v49
  %v915 = vpop.permute.xlu0 %914
  %917 = vset.pattern.permute.xlu0 6
  %918 = vperm.xlu0 %917, %v50
  %v919 = vpop.permute.xlu0 %918
  %921 = vset.pattern.permute.xlu0 6
  %922 = vperm.xlu0 %921, %v51
  %v923 = vpop.permute.xlu0 %922
  %v925 = vmul.f32 %v11, %v895
  %v926 = vmul.f32 %v12, %v895
  %v927 = vmul.f32 %v13, %v895
  %v928 = vmul.f32 %v14, %v899
  %v929 = vmul.f32 %v15, %v899
  %v930 = vmul.f32 %v16, %v899
  %v931 = vmul.f32 %v17, %v903
  %v932 = vmul.f32 %v18, %v903
  %v933 = vmul.f32 %v19, %v903
  %v934 = vmul.f32 %v20, %v907
  %v935 = vmul.f32 %v21, %v907
  %v936 = vmul.f32 %v22, %v907
  %v937 = vmul.f32 %v23, %v911
  %v938 = vmul.f32 %v24, %v911
  %v939 = vmul.f32 %v25, %v911
  %v940 = vmul.f32 %v26, %v915
  %v941 = vmul.f32 %v27, %v915
  %v942 = vmul.f32 %v28, %v915
  %v943 = vmul.f32 %v29, %v919
  %v944 = vmul.f32 %v30, %v919
  %v945 = vmul.f32 %v31, %v919
  %v946 = vmul.f32 %v32, %v923
  %v947 = vmul.f32 %v33, %v923
  %v948 = vmul.f32 %v34, %v923
  %vm973 = vcmask 1045504
  %v974 = vrot.slane %v925, 2
  %v975 = vrot.slane %v926, 2
  %v976 = vsel %vm973, %v974, %v975
  %v977 = vrot.slane %v927, 2
  %v978 = vsel %vm973, %v975, %v977
  %v979 = vrot.slane %v928, 2
  %v980 = vrot.slane %v929, 2
  %v981 = vsel %vm973, %v979, %v980
  %v982 = vrot.slane %v930, 2
  %v983 = vsel %vm973, %v980, %v982
  %v984 = vrot.slane %v931, 2
  %v985 = vrot.slane %v932, 2
  %v986 = vsel %vm973, %v984, %v985
  %v987 = vrot.slane %v933, 2
  %v988 = vsel %vm973, %v985, %v987
  %v989 = vrot.slane %v934, 2
  %v990 = vrot.slane %v935, 2
  %v991 = vsel %vm973, %v989, %v990
  %v992 = vrot.slane %v936, 2
  %v993 = vsel %vm973, %v990, %v992
  %v994 = vrot.slane %v937, 2
  %v995 = vrot.slane %v938, 2
  %v996 = vsel %vm973, %v994, %v995
  %v997 = vrot.slane %v939, 2
  %v998 = vsel %vm973, %v995, %v997
  %v999 = vrot.slane %v940, 2
  %v1000 = vrot.slane %v941, 2
  %v1001 = vsel %vm973, %v999, %v1000
  %v1002 = vrot.slane %v942, 2
  %v1003 = vsel %vm973, %v1000, %v1002
  %v1004 = vrot.slane %v943, 2
  %v1005 = vrot.slane %v944, 2
  %v1006 = vsel %vm973, %v1004, %v1005
  %v1007 = vrot.slane %v945, 2
  %v1008 = vsel %vm973, %v1005, %v1007
  %v1009 = vrot.slane %v946, 2
  %v1010 = vrot.slane %v947, 2
  %v1011 = vsel %vm973, %v1009, %v1010
  %v1012 = vrot.slane %v948, 2
  %v1013 = vsel %vm973, %v1010, %v1012
  %v1030 = vadd.f32 %v877, %v976
  %v1031 = vadd.f32 %v878, %v978
  %v1032 = vadd.f32 %v879, %v981
  %v1033 = vadd.f32 %v880, %v983
  %v1034 = vadd.f32 %v881, %v986
  %v1035 = vadd.f32 %v882, %v988
  %v1036 = vadd.f32 %v883, %v991
  %v1037 = vadd.f32 %v884, %v993
  %v1038 = vadd.f32 %v885, %v996
  %v1039 = vadd.f32 %v886, %v998
  %v1040 = vadd.f32 %v887, %v1001
  %v1041 = vadd.f32 %v888, %v1003
  %v1042 = vadd.f32 %v889, %v1006
  %v1043 = vadd.f32 %v890, %v1008
  %v1044 = vadd.f32 %v891, %v1011
  %v1045 = vadd.f32 %v892, %v1013
  %1046 = vset.pattern.permute.xlu0 7
  %1047 = vperm.xlu0 %1046, %v44
  %v1048 = vpop.permute.xlu0 %1047
  %1050 = vset.pattern.permute.xlu0 7
  %1051 = vperm.xlu0 %1050, %v45
  %v1052 = vpop.permute.xlu0 %1051
  %1054 = vset.pattern.permute.xlu0 7
  %1055 = vperm.xlu0 %1054, %v46
  %v1056 = vpop.permute.xlu0 %1055
  %1058 = vset.pattern.permute.xlu0 7
  %1059 = vperm.xlu0 %1058, %v47
  %v1060 = vpop.permute.xlu0 %1059
  %1062 = vset.pattern.permute.xlu0 7
  %1063 = vperm.xlu0 %1062, %v48
  %v1064 = vpop.permute.xlu0 %1063
  %1066 = vset.pattern.permute.xlu0 7
  %1067 = vperm.xlu0 %1066, %v49
  %v1068 = vpop.permute.xlu0 %1067
  %1070 = vset.pattern.permute.xlu0 7
  %1071 = vperm.xlu0 %1070, %v50
  %v1072 = vpop.permute.xlu0 %1071
  %1074 = vset.pattern.permute.xlu0 7
  %1075 = vperm.xlu0 %1074, %v51
  %v1076 = vpop.permute.xlu0 %1075
  %v1078 = vmul.f32 %v11, %v1048
  %v1079 = vmul.f32 %v12, %v1048
  %v1080 = vmul.f32 %v13, %v1048
  %v1081 = vmul.f32 %v14, %v1052
  %v1082 = vmul.f32 %v15, %v1052
  %v1083 = vmul.f32 %v16, %v1052
  %v1084 = vmul.f32 %v17, %v1056
  %v1085 = vmul.f32 %v18, %v1056
  %v1086 = vmul.f32 %v19, %v1056
  %v1087 = vmul.f32 %v20, %v1060
  %v1088 = vmul.f32 %v21, %v1060
  %v1089 = vmul.f32 %v22, %v1060
  %v1090 = vmul.f32 %v23, %v1064
  %v1091 = vmul.f32 %v24, %v1064
  %v1092 = vmul.f32 %v25, %v1064
  %v1093 = vmul.f32 %v26, %v1068
  %v1094 = vmul.f32 %v27, %v1068
  %v1095 = vmul.f32 %v28, %v1068
  %v1096 = vmul.f32 %v29, %v1072
  %v1097 = vmul.f32 %v30, %v1072
  %v1098 = vmul.f32 %v31, %v1072
  %v1099 = vmul.f32 %v32, %v1076
  %v1100 = vmul.f32 %v33, %v1076
  %v1101 = vmul.f32 %v34, %v1076
  %v1126 = vrot.slane %v1078, 2
  %v1127 = vrot.slane %v1079, 2
  %v1128 = vsel %vm973, %v1126, %v1127
  %v1129 = vrot.slane %v1080, 2
  %v1130 = vsel %vm973, %v1127, %v1129
  %v1131 = vrot.slane %v1081, 2
  %v1132 = vrot.slane %v1082, 2
  %v1133 = vsel %vm973, %v1131, %v1132
  %v1134 = vrot.slane %v1083, 2
  %v1135 = vsel %vm973, %v1132, %v1134
  %v1136 = vrot.slane %v1084, 2
  %v1137 = vrot.slane %v1085, 2
  %v1138 = vsel %vm973, %v1136, %v1137
  %v1139 = vrot.slane %v1086, 2
  %v1140 = vsel %vm973, %v1137, %v1139
  %v1141 = vrot.slane %v1087, 2
  %v1142 = vrot.slane %v1088, 2
  %v1143 = vsel %vm973, %v1141, %v1142
  %v1144 = vrot.slane %v1089, 2
  %v1145 = vsel %vm973, %v1142, %v1144
  %v1146 = vrot.slane %v1090, 2
  %v1147 = vrot.slane %v1091, 2
  %v1148 = vsel %vm973, %v1146, %v1147
  %v1149 = vrot.slane %v1092, 2
  %v1150 = vsel %vm973, %v1147, %v1149
  %v1151 = vrot.slane %v1093, 2
  %v1152 = vrot.slane %v1094, 2
  %v1153 = vsel %vm973, %v1151, %v1152
  %v1154 = vrot.slane %v1095, 2
  %v1155 = vsel %vm973, %v1152, %v1154
  %v1156 = vrot.slane %v1096, 2
  %v1157 = vrot.slane %v1097, 2
  %v1158 = vsel %vm973, %v1156, %v1157
  %v1159 = vrot.slane %v1098, 2
  %v1160 = vsel %vm973, %v1157, %v1159
  %v1161 = vrot.slane %v1099, 2
  %v1162 = vrot.slane %v1100, 2
  %v1163 = vsel %vm973, %v1161, %v1162
  %v1164 = vrot.slane %v1101, 2
  %v1165 = vsel %vm973, %v1162, %v1164
  %1166 = vrot.lane.b32.xlu0 %v1128, 127
  %v1167 = vpop.permute.xlu0 %1166
  %1168 = vrot.lane.b32.xlu0 %v1130, 127
  %v1169 = vpop.permute.xlu0 %1168
  %1170 = vrot.lane.b32.xlu0 %v1133, 127
  %v1171 = vpop.permute.xlu0 %1170
  %1172 = vrot.lane.b32.xlu0 %v1135, 127
  %v1173 = vpop.permute.xlu0 %1172
  %1174 = vrot.lane.b32.xlu0 %v1138, 127
  %v1175 = vpop.permute.xlu0 %1174
  %1176 = vrot.lane.b32.xlu0 %v1140, 127
  %v1177 = vpop.permute.xlu0 %1176
  %1178 = vrot.lane.b32.xlu0 %v1143, 127
  %v1179 = vpop.permute.xlu0 %1178
  %1180 = vrot.lane.b32.xlu0 %v1145, 127
  %v1181 = vpop.permute.xlu0 %1180
  %1182 = vrot.lane.b32.xlu0 %v1148, 127
  %v1183 = vpop.permute.xlu0 %1182
  %1184 = vrot.lane.b32.xlu0 %v1150, 127
  %v1185 = vpop.permute.xlu0 %1184
  %1186 = vrot.lane.b32.xlu0 %v1153, 127
  %v1187 = vpop.permute.xlu0 %1186
  %1188 = vrot.lane.b32.xlu0 %v1155, 127
  %v1189 = vpop.permute.xlu0 %1188
  %1190 = vrot.lane.b32.xlu0 %v1158, 127
  %v1191 = vpop.permute.xlu0 %1190
  %1192 = vrot.lane.b32.xlu0 %v1160, 127
  %v1193 = vpop.permute.xlu0 %1192
  %1194 = vrot.lane.b32.xlu0 %v1163, 127
  %v1195 = vpop.permute.xlu0 %1194
  %1196 = vrot.lane.b32.xlu0 %v1165, 127
  %v1197 = vpop.permute.xlu0 %1196
  %v1214 = vadd.f32 %v1030, %v1167
  %v1215 = vadd.f32 %v1031, %v1169
  %v1216 = vadd.f32 %v1032, %v1171
  %v1217 = vadd.f32 %v1033, %v1173
  %v1218 = vadd.f32 %v1034, %v1175
  %v1219 = vadd.f32 %v1035, %v1177
  %v1220 = vadd.f32 %v1036, %v1179
  %v1221 = vadd.f32 %v1037, %v1181
  %v1222 = vadd.f32 %v1038, %v1183
  %v1223 = vadd.f32 %v1039, %v1185
  %v1224 = vadd.f32 %v1040, %v1187
  %v1225 = vadd.f32 %v1041, %v1189
  %v1226 = vadd.f32 %v1042, %v1191
  %v1227 = vadd.f32 %v1043, %v1193
  %v1228 = vadd.f32 %v1044, %v1195
  %v1229 = vadd.f32 %v1045, %v1197
  %1230 = vset.pattern.permute.xlu0 8
  %1231 = vperm.xlu0 %1230, %v44
  %v1232 = vpop.permute.xlu0 %1231
  %1234 = vset.pattern.permute.xlu0 8
  %1235 = vperm.xlu0 %1234, %v45
  %v1236 = vpop.permute.xlu0 %1235
  %1238 = vset.pattern.permute.xlu0 8
  %1239 = vperm.xlu0 %1238, %v46
  %v1240 = vpop.permute.xlu0 %1239
  %1242 = vset.pattern.permute.xlu0 8
  %1243 = vperm.xlu0 %1242, %v47
  %v1244 = vpop.permute.xlu0 %1243
  %1246 = vset.pattern.permute.xlu0 8
  %1247 = vperm.xlu0 %1246, %v48
  %v1248 = vpop.permute.xlu0 %1247
  %1250 = vset.pattern.permute.xlu0 8
  %1251 = vperm.xlu0 %1250, %v49
  %v1252 = vpop.permute.xlu0 %1251
  %1254 = vset.pattern.permute.xlu0 8
  %1255 = vperm.xlu0 %1254, %v50
  %v1256 = vpop.permute.xlu0 %1255
  %1258 = vset.pattern.permute.xlu0 8
  %1259 = vperm.xlu0 %1258, %v51
  %v1260 = vpop.permute.xlu0 %1259
  %v1262 = vmul.f32 %v11, %v1232
  %v1263 = vmul.f32 %v12, %v1232
  %v1264 = vmul.f32 %v13, %v1232
  %v1265 = vmul.f32 %v14, %v1236
  %v1266 = vmul.f32 %v15, %v1236
  %v1267 = vmul.f32 %v16, %v1236
  %v1268 = vmul.f32 %v17, %v1240
  %v1269 = vmul.f32 %v18, %v1240
  %v1270 = vmul.f32 %v19, %v1240
  %v1271 = vmul.f32 %v20, %v1244
  %v1272 = vmul.f32 %v21, %v1244
  %v1273 = vmul.f32 %v22, %v1244
  %v1274 = vmul.f32 %v23, %v1248
  %v1275 = vmul.f32 %v24, %v1248
  %v1276 = vmul.f32 %v25, %v1248
  %v1277 = vmul.f32 %v26, %v1252
  %v1278 = vmul.f32 %v27, %v1252
  %v1279 = vmul.f32 %v28, %v1252
  %v1280 = vmul.f32 %v29, %v1256
  %v1281 = vmul.f32 %v30, %v1256
  %v1282 = vmul.f32 %v31, %v1256
  %v1283 = vmul.f32 %v32, %v1260
  %v1284 = vmul.f32 %v33, %v1260
  %v1285 = vmul.f32 %v34, %v1260
  %v1310 = vrot.slane %v1262, 2
  %v1311 = vrot.slane %v1263, 2
  %v1312 = vsel %vm973, %v1310, %v1311
  %v1313 = vrot.slane %v1264, 2
  %v1314 = vsel %vm973, %v1311, %v1313
  %v1315 = vrot.slane %v1265, 2
  %v1316 = vrot.slane %v1266, 2
  %v1317 = vsel %vm973, %v1315, %v1316
  %v1318 = vrot.slane %v1267, 2
  %v1319 = vsel %vm973, %v1316, %v1318
  %v1320 = vrot.slane %v1268, 2
  %v1321 = vrot.slane %v1269, 2
  %v1322 = vsel %vm973, %v1320, %v1321
  %v1323 = vrot.slane %v1270, 2
  %v1324 = vsel %vm973, %v1321, %v1323
  %v1325 = vrot.slane %v1271, 2
  %v1326 = vrot.slane %v1272, 2
  %v1327 = vsel %vm973, %v1325, %v1326
  %v1328 = vrot.slane %v1273, 2
  %v1329 = vsel %vm973, %v1326, %v1328
  %v1330 = vrot.slane %v1274, 2
  %v1331 = vrot.slane %v1275, 2
  %v1332 = vsel %vm973, %v1330, %v1331
  %v1333 = vrot.slane %v1276, 2
  %v1334 = vsel %vm973, %v1331, %v1333
  %v1335 = vrot.slane %v1277, 2
  %v1336 = vrot.slane %v1278, 2
  %v1337 = vsel %vm973, %v1335, %v1336
  %v1338 = vrot.slane %v1279, 2
  %v1339 = vsel %vm973, %v1336, %v1338
  %v1340 = vrot.slane %v1280, 2
  %v1341 = vrot.slane %v1281, 2
  %v1342 = vsel %vm973, %v1340, %v1341
  %v1343 = vrot.slane %v1282, 2
  %v1344 = vsel %vm973, %v1341, %v1343
  %v1345 = vrot.slane %v1283, 2
  %v1346 = vrot.slane %v1284, 2
  %v1347 = vsel %vm973, %v1345, %v1346
  %v1348 = vrot.slane %v1285, 2
  %v1349 = vsel %vm973, %v1346, %v1348
  %1350 = vrot.lane.b32.xlu0 %v1312, 126
  %v1351 = vpop.permute.xlu0 %1350
  %1352 = vrot.lane.b32.xlu0 %v1314, 126
  %v1353 = vpop.permute.xlu0 %1352
  %1354 = vrot.lane.b32.xlu0 %v1317, 126
  %v1355 = vpop.permute.xlu0 %1354
  %1356 = vrot.lane.b32.xlu0 %v1319, 126
  %v1357 = vpop.permute.xlu0 %1356
  %1358 = vrot.lane.b32.xlu0 %v1322, 126
  %v1359 = vpop.permute.xlu0 %1358
  %1360 = vrot.lane.b32.xlu0 %v1324, 126
  %v1361 = vpop.permute.xlu0 %1360
  %1362 = vrot.lane.b32.xlu0 %v1327, 126
  %v1363 = vpop.permute.xlu0 %1362
  %1364 = vrot.lane.b32.xlu0 %v1329, 126
  %v1365 = vpop.permute.xlu0 %1364
  %1366 = vrot.lane.b32.xlu0 %v1332, 126
  %v1367 = vpop.permute.xlu0 %1366
  %1368 = vrot.lane.b32.xlu0 %v1334, 126
  %v1369 = vpop.permute.xlu0 %1368
  %1370 = vrot.lane.b32.xlu0 %v1337, 126
  %v1371 = vpop.permute.xlu0 %1370
  %1372 = vrot.lane.b32.xlu0 %v1339, 126
  %v1373 = vpop.permute.xlu0 %1372
  %1374 = vrot.lane.b32.xlu0 %v1342, 126
  %v1375 = vpop.permute.xlu0 %1374
  %1376 = vrot.lane.b32.xlu0 %v1344, 126
  %v1377 = vpop.permute.xlu0 %1376
  %1378 = vrot.lane.b32.xlu0 %v1347, 126
  %v1379 = vpop.permute.xlu0 %1378
  %1380 = vrot.lane.b32.xlu0 %v1349, 126
  %v1381 = vpop.permute.xlu0 %1380
  %v1398 = vadd.f32 %v1214, %v1351
  %v1399 = vadd.f32 %v1215, %v1353
  %v1400 = vadd.f32 %v1216, %v1355
  %v1401 = vadd.f32 %v1217, %v1357
  %v1402 = vadd.f32 %v1218, %v1359
  %v1403 = vadd.f32 %v1219, %v1361
  %v1404 = vadd.f32 %v1220, %v1363
  %v1405 = vadd.f32 %v1221, %v1365
  %v1406 = vadd.f32 %v1222, %v1367
  %v1407 = vadd.f32 %v1223, %v1369
  %v1408 = vadd.f32 %v1224, %v1371
  %v1409 = vadd.f32 %v1225, %v1373
  %v1410 = vadd.f32 %v1226, %v1375
  %v1411 = vadd.f32 %v1227, %v1377
  %v1412 = vadd.f32 %v1228, %v1379
  %v1413 = vadd.f32 %v1229, %v1381
  %vm1414 = vcmask 130048
  %1415 = vst.msk [vmem:[%s2] sm:$0xff] %vm1414, %v1398
  %1416 = vst.msk [vmem:[%s2 + $0x8] sm:$0xff] %vm1414, %v1399
  %1417 = vst.msk [vmem:[%s2 + $0x10] sm:$0xff] %vm1414, %v1400
  %1418 = vst.msk [vmem:[%s2 + $0x18] sm:$0xff] %vm1414, %v1401
  %1419 = vst.msk [vmem:[%s2 + $0x20] sm:$0xff] %vm1414, %v1402
  %1420 = vst.msk [vmem:[%s2 + $0x28] sm:$0xff] %vm1414, %v1403
  %1421 = vst.msk [vmem:[%s2 + $0x30] sm:$0xff] %vm1414, %v1404
  %1422 = vst.msk [vmem:[%s2 + $0x38] sm:$0xff] %vm1414, %v1405
  %1423 = vst.msk [vmem:[%s2 + $0x40] sm:$0xff] %vm1414, %v1406
  %1424 = vst.msk [vmem:[%s2 + $0x48] sm:$0xff] %vm1414, %v1407
  %1425 = vst.msk [vmem:[%s2 + $0x50] sm:$0xff] %vm1414, %v1408
  %1426 = vst.msk [vmem:[%s2 + $0x58] sm:$0xff] %vm1414, %v1409
  %1427 = vst.msk [vmem:[%s2 + $0x60] sm:$0xff] %vm1414, %v1410
  %1428 = vst.msk [vmem:[%s2 + $0x68] sm:$0xff] %vm1414, %v1411
  %1429 = vst.msk [vmem:[%s2 + $0x70] sm:$0xff] %vm1414, %v1412
  %1430 = vst.msk [vmem:[%s2 + $0x78] sm:$0xff] %vm1414, %v1413
  // Predicated region
  $region10: #{shufflenet_cs_block_forward.8} parent=0 // pred_check
    _
  $region11: #{shufflenet_cs_block_forward.8} parent=0 // pred_check_branch
    %1432 = sbr.rel (0) target = $region13
  $region12: #{shufflenet_cs_block_forward.8} parent=0 // pred_region
    _
  $region13: #{shufflenet_cs_block_forward.8} parent=0 // pred_fallthru
    _
  // Predicated region
  $region14: #{shufflenet_cs_block_forward.8} parent=0 // pred_check
    _
  $region15: #{shufflenet_cs_block_forward.8} parent=0 // pred_check_branch
    %1434 = sbr.rel (0) target = $region17
  $region16: #{shufflenet_cs_block_forward.8} parent=0 // pred_region
    _
  $region17: #{shufflenet_cs_block_forward.8} parent=0 // pred_fallthru
    _

// kernel: shufflenet_cs_block_forward.11
$region0: #{shufflenet_cs_block_forward.11}
  #allocation0 [shape = 'u32[]', space=smem, size = 0x4, offset = 0x4, fixed_abs, tag = 'smem constant byte address 0x4 - core index']
  #allocation1 [shape = 'u32[72,128]{1,0:T(1,128)}', space=vmem, size = 0x9000, scoped, tag = 'internal scratch']
  %s0 = inlined_call_operand.vmem [shape: f32[6,512], index: 0, kind: input, shape index: {}]
  %s1 = inlined_call_operand.vmem [shape: f32[6,1], index: 1, kind: input, shape index: {}]
  %s2 = inlined_call_operand.vmem [shape: f32[6,1], index: 2, kind: input, shape index: {}]
  %s3 = inlined_call_operand.vmem [shape: f32[6,512], index: 3, kind: output, shape index: {}]
  %s4 = sld [smem:[#allocation0]]
  $region22: #{shufflenet_cs_block_forward.11} parent=0
    _
  %s6 = ssub.s32 1, %s4
  %s7 = scalar_select 0, %s6, %s4
  // Predicated region
  $region2: #{shufflenet_cs_block_forward.11} parent=0 // pred_check
    _
  $region3: #{shufflenet_cs_block_forward.11} parent=0 // pred_check_branch
    %9 = sbr.rel (0) target = $region5
  $region4: #{shufflenet_cs_block_forward.11} parent=0 // pred_region
    _
  $region5: #{shufflenet_cs_block_forward.11} parent=0 // pred_fallthru
    _
  // Predicated region
  $region6: #{shufflenet_cs_block_forward.11} parent=0 // pred_check
    _
  $region7: #{shufflenet_cs_block_forward.11} parent=0 // pred_check_branch
    %11 = sbr.rel (0) target = $region9
  $region8: #{shufflenet_cs_block_forward.11} parent=0 // pred_region
    _
  $region9: #{shufflenet_cs_block_forward.11} parent=0 // pred_fallthru
    _
  // Predicated region
  $region10: #{shufflenet_cs_block_forward.11} parent=0 // pred_check
    _
  $region11: #{shufflenet_cs_block_forward.11} parent=0 // pred_check_branch
    %13 = sbr.rel (0) target = $region13
  $region12: #{shufflenet_cs_block_forward.11} parent=0 // pred_region
    _
  $region13: #{shufflenet_cs_block_forward.11} parent=0 // pred_fallthru
    _
  %v14 = vld [vmem:[%s0] sm:$0x3f]
  %v15 = vld [vmem:[%s0 + $0x8] sm:$0x3f]
  %v16 = vld [vmem:[%s0 + $0x10] sm:$0x3f]
  %v17 = vld [vmem:[%s0 + $0x18] sm:$0x3f]
  %v18 = vld [vmem:[%s1] sm:$0x3f]
  %20 = vset.pattern.permute.xlu0 0
  %21 = vperm.xlu0 %20, %v18
  %v22 = vpop.permute.xlu0 %21
  %v24 = vmul.f32 %v14, %v22
  %v25 = vmul.f32 %v15, %v22
  %v26 = vmul.f32 %v16, %v22
  %v27 = vmul.f32 %v17, %v22
  %v28 = vld [vmem:[%s2] sm:$0x3f]
  %30 = vset.pattern.permute.xlu0 0
  %31 = vperm.xlu0 %30, %v28
  %v32 = vpop.permute.xlu0 %31
  %v34 = vadd.f32 %v24, %v32
  %v35 = vadd.f32 %v25, %v32
  %v36 = vadd.f32 %v26, %v32
  %v37 = vadd.f32 %v27, %v32
  %v38 = vmax.f32 %v34, 0.0
  %v39 = vmax.f32 %v35, 0.0
  %v40 = vmax.f32 %v36, 0.0
  %v41 = vmax.f32 %v37, 0.0
  %42 = vst [vmem:[%s3] sm:$0x3f] %v38
  %43 = vst [vmem:[%s3 + $0x8] sm:$0x3f] %v39
  %44 = vst [vmem:[%s3 + $0x10] sm:$0x3f] %v40
  %45 = vst [vmem:[%s3 + $0x18] sm:$0x3f] %v41
  // Predicated region
  $region14: #{shufflenet_cs_block_forward.11} parent=0 // pred_check
    _
  $region15: #{shufflenet_cs_block_forward.11} parent=0 // pred_check_branch
    %47 = sbr.rel (0) target = $region17
  $region16: #{shufflenet_cs_block_forward.11} parent=0 // pred_region
    _
  $region17: #{shufflenet_cs_block_forward.11} parent=0 // pred_fallthru
    _
  // Predicated region
  $region18: #{shufflenet_cs_block_forward.11} parent=0 // pred_check
    _
  $region19: #{shufflenet_cs_block_forward.11} parent=0 // pred_check_branch
    %49 = sbr.rel (0) target = $region21
  $region20: #{shufflenet_cs_block_forward.11} parent=0 // pred_region
    _
  $region21: #{shufflenet_cs_block_forward.11} parent=0 // pred_fallthru
    _

</llo_original>
